<compile_context>
chip_gen: v7x
topology: tpu7x:2x2x1
jax: 0.10.0
libtpu: 0.0.40
codegen_flags: <defaults>
</compile_context>

<pallas_src>
import functools

import jax
import jax.numpy as jnp
from jax.experimental import pallas as pl
from jax.experimental.pallas import tpu as pltpu

_LANES = 128          # vreg lane width
_K_ALIGN = 16         # pad matmul contraction dims for bf16 sublane packing
_TILE_CAP = 2048      # max lanes per grid step (keeps per-step VMEM ~ a few MiB at C=32)


def _round_up(n, m):
    return (n + m - 1) // m * m


# --------------------------------------------------------------------------- #
# Wrapper-side layout helpers (small tensors, plain XLA ops).
# --------------------------------------------------------------------------- #
def _to_cm_padded(t_nchw, m_pad_to):
    """(B, C, h, w) -> channel-major (C, B*h*w) zero-padded to m_pad_to columns."""
    b, c, h, w = t_nchw.shape
    cm = jnp.transpose(t_nchw, (1, 0, 2, 3)).reshape(c, b * h * w)
    extra = m_pad_to - b * h * w
    if extra:
        cm = jnp.pad(cm, ((0, 0), (0, extra)))
    return cm


def _cm_to_nchw(t_cm, b, h, w):
    c = t_cm.shape[0]
    return jnp.transpose(t_cm.reshape(c, b, h, w), (1, 0, 2, 3))


def _im2col_cm(x_nchw, K, stride, pad, rows_to, cols_to, dtype=jnp.bfloat16):
    """Stage-1 im2col patches built DIRECTLY channel-major (K*K*C, B*Ho*Wo):
    per-tap (C, M) slabs concatenated along axis 0 (row = (dy*K+dx)*C + c), so the
    amplified tensor is never transposed.  Zero-padded to (rows_to, cols_to), bf16."""
    B, C, H, W = x_nchw.shape
    Ho = (H + 2 * pad - K) // stride + 1
    Wo = (W + 2 * pad - K) // stride + 1
    xc = jnp.transpose(x_nchw, (1, 0, 2, 3))                     # (C, B, H, W)
    xp = jnp.pad(xc, ((0, 0), (0, 0), (pad, pad), (pad, pad)))
    rows = []
    for dy in range(K):
        for dx in range(K):
            tap = xp[:, :, dy:dy + (Ho - 1) * stride + 1:stride,
                     dx:dx + (Wo - 1) * stride + 1:stride]       # (C, B, Ho, Wo)
            rows.append(tap.reshape(C, B * Ho * Wo))
    p = jnp.concatenate(rows, axis=0)                            # (K*K*C, M)
    p = jnp.pad(p, ((0, rows_to - p.shape[0]), (0, cols_to - p.shape[1])))
    return p.astype(dtype)


def _tap_masks(K, Ho, Wo, tile):
    """(K*K, 1, tile) {0,1} bf16 masks implementing conv zero padding for the
    in-kernel lane-shift convolutions.  Valid for every tile because tiles start
    at image boundaries (or cover all of M)."""
    pad = K // 2
    m = jnp.arange(tile, dtype=jnp.int32) % (Ho * Wo)
    xpos = m % Wo
    ypos = m // Wo
    rows = []
    for dy in range(K):
        for dx in range(K):
            sy, sx = dy - pad, dx - pad
            rows.append((xpos + sx >= 0) & (xpos + sx < Wo) &
                        (ypos + sy >= 0) & (ypos + sy < Ho))
    return jnp.stack(rows)[:, None, :].astype(jnp.bfloat16)


def _pick_image_tile(Mp, HW, cap=_TILE_CAP):
    """Largest tile <= cap that is a multiple of 128 (lane-dense stores), a multiple
    of Ho*Wo (whole images per tile, required by the in-kernel lane shifts) and a
    divisor of the padded M.  Falls back to a single tile over all of Mp."""
    best = Mp
    t = HW
    while t <= min(cap, Mp):
        if t % _LANES == 0 and Mp % t == 0:
            best = t
        t += HW
    return best


# --------------------------------------------------------------------------- #
# Parameter preprocessing (hoisted out of the per-timestep forward).
# --------------------------------------------------------------------------- #
def prepare_params(params):
    """Weight transposes, bf16 casts, sigmoid(leak) and folding of (1 - sigmoid(leak))
    into the conv weights/biases.  Call once; reuse for every timestep."""
    w1 = params["conv_ff_w"].astype(jnp.float32)                 # (C, Cin, K, K)
    C, _, K, _ = w1.shape
    l1 = jax.nn.sigmoid(params["conv_leak"].reshape(C, 1).astype(jnp.float32))
    l2 = jax.nn.sigmoid(params["rec_leak"].reshape(C, 1).astype(jnp.float32))
    g1 = 1.0 - l1
    g2 = 1.0 - l2

    def tap_mat(w):
        # (Co, Ci, K, K) -> (Co, K*K*Ci), column = (dy*K + dx)*Ci + ci
        Co, Ci = w.shape[0], w.shape[1]
        return jnp.transpose(w, (0, 2, 3, 1)).reshape(Co, K * K * Ci)

    # Stage 1: fold (1 - leak1) into weight + bias, pad contraction dim to 16.
    w1f = tap_mat(w1 * g1[:, :, None, None])
    pad1 = _round_up(w1f.shape[1], _K_ALIGN) - w1f.shape[1]
    if pad1:
        w1f = jnp.pad(w1f, ((0, 0), (0, pad1)))
    b1 = (params["conv_ff_b"].reshape(C, 1) * g1).astype(jnp.float32)

    # Stage 2: fuse ff-conv(x1) + rec-conv(prev_rec) by concatenating input channels;
    # fold (1 - leak2) into both weights and the summed bias.
    w_cat = jnp.concatenate([params["rec_ff_w"], params["rec_rec_w"]],
                            axis=1).astype(jnp.float32) * g2[:, :, None, None]
    wg = tap_mat(w_cat)                                          # (C, K*K*2C)
    bg = ((params["rec_ff_b"] + params["rec_rec_b"]).reshape(C, 1) * g2).astype(jnp.float32)

    # Stage 3: output conv.
    wo = tap_mat(params["rec_out_w"].astype(jnp.float32))        # (C, K*K*C)
    bo = params["rec_out_b"].reshape(C, 1).astype(jnp.float32)

    return {"w1T": w1f.astype(jnp.bfloat16), "b1": b1, "l1": l1,
            "wg": wg.astype(jnp.bfloat16), "bg": bg, "l2": l2,
            "wo": wo.astype(jnp.bfloat16), "bo": bo}


# --------------------------------------------------------------------------- #
# Fused Pallas kernel: the whole layer step on one (C, TILE) lane slab.
# Layout: channel-major, lane dim = B*Ho*Wo (tiles contain whole images).
# --------------------------------------------------------------------------- #
def _layer_kernel(p1_ref, prevff_ref, prevrec_ref, mask_ref,
                  w1_ref, b1_ref, l1_ref,
                  wg_ref, bg_ref, l2_ref,
                  wo_ref, bo_ref,
                  x2_ref, ffstate_ref, recstate_ref, *, tap_starts):
    C, TM = ffstate_ref.shape

    # ---- Stage 1: ConvLeaky --------------------------------------------------
    # Strided conv as one im2col matmul (bf16 operands, f32 accumulation);
    # (1 - sigmoid(leak1)) is pre-folded into w1/b1, l1 = sigmoid(leak1).
    acc1 = jnp.dot(w1_ref[...], p1_ref[...], preferred_element_type=jnp.float32)
    ff_state = prevff_ref[...] * l1_ref[...] + acc1 + b1_ref[...]
    ffstate_ref[...] = ff_state.astype(ffstate_ref.dtype)
    x1 = jnp.maximum(ff_state, 0.0).astype(jnp.bfloat16)             # relu, bf16

    masks = mask_ref[...]                                             # (K*K, 1, TM)
    prev = prevrec_ref[...]                                           # (C, TM) f32

    # ---- Stage 2: ConvLeakyRecurrent state -----------------------------------
    # ff-conv(x1) + rec-conv(prev_rec) fused: per conv tap, one (C,2C)x(2C,TM) MXU
    # matmul on a lane-shifted view of [x1 ; prev_rec].  Lane shifts are static
    # slices of a doubled slab; zero padding is applied via the precomputed masks.
    xin = jnp.concatenate([x1, prev.astype(jnp.bfloat16)], axis=0)    # (2C, TM)
    xin2 = jnp.concatenate([xin, xin], axis=1)                        # (2C, 2*TM)
    g = jnp.zeros((C, TM), jnp.float32)
    for t, st in enumerate(tap_starts):
        shifted = xin2[:, st:st + TM] * masks[t]
        g = g + jnp.dot(wg_ref[:, t * 2 * C:(t + 1) * 2 * C], shifted,
                        preferred_element_type=jnp.float32)
    rec_state = jnp.tanh(prev * l2_ref[...] + g + bg_ref[...])
    recstate_ref[...] = rec_state.astype(recstate_ref.dtype)

    # ---- Stage 3: output conv + relu ------------------------------------------
    sbf = rec_state.astype(jnp.bfloat16)
    s2 = jnp.concatenate([sbf, sbf], axis=1)                          # (C, 2*TM)
    acc3 = jnp.zeros((C, TM), jnp.float32)
    for t, st in enumerate(tap_starts):
        shifted = s2[:, st:st + TM] * masks[t]
        acc3 = acc3 + jnp.dot(wo_ref[:, t * C:(t + 1) * C], shifted,
                              preferred_element_type=jnp.float32)
    x2_ref[...] = jnp.maximum(acc3 + bo_ref[...], 0.0).astype(x2_ref.dtype)


def _layer_pallas(p1, prev_ff, prev_rec, masks, prep, *, tap_starts, tile):
    KKC1, Mp = p1.shape
    C = prep["wo"].shape[0]
    KK = masks.shape[0]
    n_t = Mp // tile

    kernel = functools.partial(_layer_kernel, tap_starts=tap_starts)

    def stream(nrows):
        return pl.BlockSpec((nrows, tile), lambda i: (0, i))

    def const(arr):
        zeros = (0,) * arr.ndim
        return pl.BlockSpec(arr.shape, lambda i, _z=zeros: _z)

    # Deeper buffering on the streamed patch operand only pays off with a real
    # pipeline (helps most on bandwidth-starved v5e); skip it for tiny grids.
    if n_t >= 4:
        p1_spec = pl.BlockSpec((KKC1, tile), lambda i: (0, i),
                               pipeline_mode=pl.Buffered(3))
    else:
        p1_spec = stream(KKC1)

    in_specs = [p1_spec, stream(C), stream(C), const(masks),
                const(prep["w1T"]), const(prep["b1"]), const(prep["l1"]),
                const(prep["wg"]), const(prep["bg"]), const(prep["l2"]),
                const(prep["wo"]), const(prep["bo"])]
    out_specs = [stream(C), stream(C), stream(C)]
    out_shape = (jax.ShapeDtypeStruct((C, Mp), jnp.bfloat16),   # x2 (bf16: halves writeback)
                 jax.ShapeDtypeStruct((C, Mp), jnp.float32),    # ff_state
                 jax.ShapeDtypeStruct((C, Mp), jnp.float32))    # rec_state

    flops = int(2 * C * Mp * (KKC1 + 2 * KK * C + KK * C))
    nbytes = lambda a: int(a.size) * a.dtype.itemsize
    bytes_accessed = int(sum(nbytes(a) for a in
                             (p1, prev_ff, prev_rec, masks,
                              prep["w1T"], prep["b1"], prep["l1"],
                              prep["wg"], prep["bg"], prep["l2"],
                              prep["wo"], prep["bo"]))
                         + C * Mp * (2 + 4 + 4))
    cost = pl.CostEstimate(flops=flops, transcendentals=int(C * Mp),
                           bytes_accessed=bytes_accessed)

    return pl.pallas_call(
        kernel,
        out_shape=out_shape,
        grid_spec=pltpu.PrefetchScalarGridSpec(
            num_scalar_prefetch=0,
            grid=(n_t,),
            in_specs=in_specs,
            out_specs=out_specs,
        ),
        compiler_params=pltpu.CompilerParams(
            # Only shard across TensorCores (v7x) when there is real per-step work.
            dimension_semantics=("parallel" if n_t >= 4 else "arbitrary",),
            # Explicit VMEM budget: at TILE<=2048 and C=32 the streamed blocks +
            # temporaries stay well under a few MiB; 48 MiB fits every generation.
            vmem_limit_bytes=48 * 1024 * 1024),
        cost_estimate=cost,
    )(p1, prev_ff, prev_rec, masks,
      prep["w1T"], prep["b1"], prep["l1"],
      prep["wg"], prep["bg"], prep["l2"],
      prep["wo"], prep["bo"])


# --------------------------------------------------------------------------- #
# LeakyRecurrentConvLayer.forward
# --------------------------------------------------------------------------- #
def leaky_recurrent_conv_layer_forward(x, prep, prev_state=None, *, stride=2):
    """x: (B, C_in, H, W); prep: prepare_params(params); prev_state: None or
    (2, B, C_out, Ho, Wo) [stack(ff, rec)].  Returns (x2, stack([ff_state, rec_state]))."""
    B, _, H, W = x.shape
    C = prep["wo"].shape[0]
    KK = prep["wo"].shape[1] // C
    K = int(round(KK ** 0.5))
    pad = K // 2
    Ho = (H + 2 * pad - K) // stride + 1
    Wo = (W + 2 * pad - K) // stride + 1
    HW = Ho * Wo
    M = B * HW
    Mp = _round_up(M, _LANES)
    tile = _pick_image_tile(Mp, HW)

    if prev_state is None:
        prev_ff = jnp.zeros((C, Mp), jnp.float32)
        prev_rec = jnp.zeros((C, Mp), jnp.float32)
    else:
        prev_ff = _to_cm_padded(prev_state[0].astype(jnp.float32), Mp)
        prev_rec = _to_cm_padded(prev_state[1].astype(jnp.float32), Mp)

    # Stage-1 im2col patches (the only wrapper-side im2col left; C_in is tiny).
    p1 = _im2col_cm(x, K, stride, pad, rows_to=prep["w1T"].shape[1], cols_to=Mp)

    masks = _tap_masks(K, Ho, Wo, tile)
    tap_starts = tuple((((dy - pad) * Wo + (dx - pad)) % tile)
                       for dy in range(K) for dx in range(K))

    x2_cm, ff_cm, rec_cm = _layer_pallas(p1, prev_ff, prev_rec, masks, prep,
                                         tap_starts=tap_starts, tile=tile)

    x2 = _cm_to_nchw(x2_cm[:, :M], B, Ho, Wo).astype(jnp.float32)
    ff_state = _cm_to_nchw(ff_cm[:, :M], B, Ho, Wo)
    rec_state = _cm_to_nchw(rec_cm[:, :M], B, Ho, Wo)
    return x2, jnp.stack([ff_state, rec_state])


# --------------------------------------------------------------------------- #
# Pure-JAX reference (mirrors the PyTorch forward, full f32).
# --------------------------------------------------------------------------- #
def reference_forward(x, params, prev_state=None, *, stride=2):
    K = params["conv_ff_w"].shape[-1]
    pad = K // 2

    def conv(inp, w, b, s):
        y = jax.lax.conv_general_dilated(
            inp, w, window_strides=(s, s), padding=((pad, pad), (pad, pad)),
            dimension_numbers=("NCHW", "OIHW", "NCHW"))
        return y + b[None, :, None, None]

    ff = conv(x, params["conv_ff_w"], params["conv_ff_b"], stride)
    if prev_state is None:
        prev_ff = jnp.zeros_like(ff)
        prev_rec = jnp.zeros_like(ff)
    else:
        prev_ff, prev_rec = prev_state[0], prev_state[1]

    leak1 = jax.nn.sigmoid(params["conv_leak"])[None]        # (1, C, 1, 1)
    ff_state = prev_ff * leak1 + (1.0 - leak1) * ff
    x1 = jax.nn.relu(ff_state)

    ff2 = conv(x1, params["rec_ff_w"], params["rec_ff_b"], 1)
    rec = conv(prev_rec, params["rec_rec_w"], params["rec_rec_b"], 1)
    leak2 = jax.nn.sigmoid(params["rec_leak"])[None]
    rec_state = jnp.tanh(prev_rec * leak2 + (1.0 - leak2) * (ff2 + rec))
    x2 = jax.nn.relu(conv(rec_state, params["rec_out_w"], params["rec_out_b"], 1))
    return x2, jnp.stack([ff_state, rec_state])


if __name__ == "__main__":
    C_IN, C_OUT, K, STRIDE = 4, 32, 3, 2
    B, H, W = 2, 16, 16

    key = jax.random.PRNGKey(0)
    ks = jax.random.split(key, 11)

    def rnd(k, shape, scale):
        return scale * jax.random.normal(k, shape, jnp.float32)

    params = {
        "conv_ff_w": rnd(ks[0], (C_OUT, C_IN, K, K), 0.1),
        "conv_ff_b": rnd(ks[1], (C_OUT,), 0.05),
        "conv_leak": -4.0 + 0.1 * jax.random.normal(ks[2], (C_OUT, 1, 1), jnp.float32),
        "rec_ff_w": rnd(ks[3], (C_OUT, C_OUT, K, K), 0.06),
        "rec_ff_b": rnd(ks[4], (C_OUT,), 0.05),
        "rec_rec_w": rnd(ks[5], (C_OUT, C_OUT, K, K), 0.06),
        "rec_rec_b": rnd(ks[6], (C_OUT,), 0.05),
        "rec_out_w": rnd(ks[7], (C_OUT, C_OUT, K, K), 0.06),
        "rec_out_b": rnd(ks[8], (C_OUT,), 0.05),
        "rec_leak": -4.0 + 0.1 * jax.random.normal(ks[9], (C_OUT, 1, 1), jnp.float32),
    }
    x = jax.random.normal(ks[10], (B, C_IN, H, W), jnp.float32)

    prep = prepare_params(params)       # hoisted once, reused every timestep
    fwd = jax.jit(leaky_recurrent_conv_layer_forward)

    # Step 1: prev_state = None.
    x2, state = fwd(x, prep)
    jax.block_until_ready((x2, state))
    assert x2.shape == (B, C_OUT, H // 2, W // 2)
    assert state.shape == (2, B, C_OUT, H // 2, W // 2)

    ref_x2, ref_state = reference_forward(x, params, None, stride=STRIDE)
    assert bool(jnp.allclose(x2, ref_x2, atol=2e-2, rtol=2e-2))
    assert bool(jnp.allclose(state, ref_state, atol=2e-2, rtol=2e-2))

    # Step 2: feed the state back (exercises leak*prev_state and the rec-conv path).
    x2b, state_b = fwd(x, prep, state)
    jax.block_until_ready((x2b, state_b))
    ref_x2b, ref_state_b = reference_forward(x, params, state, stride=STRIDE)
    assert bool(jnp.allclose(x2b, ref_x2b, atol=2e-2, rtol=2e-2))
    assert bool(jnp.allclose(state_b, ref_state_b, atol=2e-2, rtol=2e-2))

    print("KERNEL_OK")
</pallas_src>

<mosaic_0001>
module attributes {stable_mosaic.version = 11 : i64} {
  func.func @_layer_kernel(%arg0: i32, %arg1: memref<48x128xbf16, #tpu.memory_space<vmem>>, %arg2: memref<32x128xf32, #tpu.memory_space<vmem>>, %arg3: memref<32x128xf32, #tpu.memory_space<vmem>>, %arg4: memref<9x1x128xbf16, #tpu.memory_space<vmem>>, %arg5: memref<32x48xbf16, #tpu.memory_space<vmem>>, %arg6: memref<32x1xf32, #tpu.memory_space<vmem>>, %arg7: memref<32x1xf32, #tpu.memory_space<vmem>>, %arg8: memref<32x576xbf16, #tpu.memory_space<vmem>>, %arg9: memref<32x1xf32, #tpu.memory_space<vmem>>, %arg10: memref<32x1xf32, #tpu.memory_space<vmem>>, %arg11: memref<32x288xbf16, #tpu.memory_space<vmem>>, %arg12: memref<32x1xf32, #tpu.memory_space<vmem>>, %arg13: memref<32x128xbf16, #tpu.memory_space<vmem>>, %arg14: memref<32x128xf32, #tpu.memory_space<vmem>>, %arg15: memref<32x128xf32, #tpu.memory_space<vmem>>) attributes {dimension_semantics = [#tpu.dimension_semantics<arbitrary>], iteration_bounds = array<i64: 1>, scalar_prefetch = 0 : i64, scratch_operands = 0 : i64, tpu.core_type = #tpu.core_type<tc>, window_params = [{transform_indices = @transform_0, window_bounds = array<i64: 48, 128>}, {transform_indices = @transform_1, window_bounds = array<i64: 32, 128>}, {transform_indices = @transform_2, window_bounds = array<i64: 32, 128>}, {pipeline_mode = #tpu.pipeline_mode<synchronous>, transform_indices = @transform_3, window_bounds = array<i64: 9, 1, 128>}, {pipeline_mode = #tpu.pipeline_mode<synchronous>, transform_indices = @transform_4, window_bounds = array<i64: 32, 48>}, {pipeline_mode = #tpu.pipeline_mode<synchronous>, transform_indices = @transform_5, window_bounds = array<i64: 32, 1>}, {pipeline_mode = #tpu.pipeline_mode<synchronous>, transform_indices = @transform_6, window_bounds = array<i64: 32, 1>}, {pipeline_mode = #tpu.pipeline_mode<synchronous>, transform_indices = @transform_7, window_bounds = array<i64: 32, 576>}, {pipeline_mode = #tpu.pipeline_mode<synchronous>, transform_indices = @transform_8, window_bounds = array<i64: 32, 1>}, {pipeline_mode = #tpu.pipeline_mode<synchronous>, transform_indices = @transform_9, window_bounds = array<i64: 32, 1>}, {pipeline_mode = #tpu.pipeline_mode<synchronous>, transform_indices = @transform_10, window_bounds = array<i64: 32, 288>}, {pipeline_mode = #tpu.pipeline_mode<synchronous>, transform_indices = @transform_11, window_bounds = array<i64: 32, 1>}, {transform_indices = @transform_12, window_bounds = array<i64: 32, 128>}, {transform_indices = @transform_13, window_bounds = array<i64: 32, 128>}, {transform_indices = @transform_14, window_bounds = array<i64: 32, 128>}]} {
    %c0 = arith.constant 0 : index
    %c0_0 = arith.constant 0 : index
    %0 = vector.load %arg5[%c0, %c0_0] : memref<32x48xbf16, #tpu.memory_space<vmem>>, vector<32x48xbf16>
    %c0_1 = arith.constant 0 : index
    %c0_2 = arith.constant 0 : index
    %1 = vector.load %arg1[%c0_1, %c0_2] : memref<48x128xbf16, #tpu.memory_space<vmem>>, vector<48x128xbf16>
    %cst = arith.constant dense<0.000000e+00> : vector<32x128xf32>
    %2 = tpu.matmul %0, %1, %cst {dimension_numbers = #tpu.dot_dimension_numbers<[1], [0], [0], [1], [0, 0, 1, 1], [], []>} : vector<32x48xbf16>, vector<48x128xbf16>, vector<32x128xf32> -> vector<32x128xf32>
    %c0_3 = arith.constant 0 : index
    %c0_4 = arith.constant 0 : index
    %3 = vector.load %arg2[%c0_3, %c0_4] : memref<32x128xf32, #tpu.memory_space<vmem>>, vector<32x128xf32>
    %c0_5 = arith.constant 0 : index
    %c0_6 = arith.constant 0 : index
    %4 = vector.load %arg7[%c0_5, %c0_6] : memref<32x1xf32, #tpu.memory_space<vmem>>, vector<32x1xf32>
    %5 = vector.broadcast %4 : vector<32x1xf32> to vector<32x128xf32>
    %6 = arith.mulf %3, %5 : vector<32x128xf32>
    %7 = arith.addf %6, %2 : vector<32x128xf32>
    %c0_7 = arith.constant 0 : index
    %c0_8 = arith.constant 0 : index
    %8 = vector.load %arg6[%c0_7, %c0_8] : memref<32x1xf32, #tpu.memory_space<vmem>>, vector<32x1xf32>
    %9 = vector.broadcast %8 : vector<32x1xf32> to vector<32x128xf32>
    %10 = arith.addf %7, %9 : vector<32x128xf32>
    %c0_9 = arith.constant 0 : index
    %c0_10 = arith.constant 0 : index
    %11 = vector.load %arg14[%c0_9, %c0_10] : memref<32x128xf32, #tpu.memory_space<vmem>>, vector<32x128xf32>
    tpu.vector_store %arg14[%c0_9, %c0_10], %10 {strides = array<i32>} : memref<32x128xf32, #tpu.memory_space<vmem>>, vector<32x128xf32>,
    %cst_11 = arith.constant 0.000000e+00 : f32
    %12 = vector.broadcast %cst_11 : f32 to vector<32x128xf32>
    %13 = arith.maximumf %10, %12 : vector<32x128xf32>
    %14 = arith.truncf %13 : vector<32x128xf32> to vector<32x128xbf16>
    %c0_12 = arith.constant 0 : index
    %c0_13 = arith.constant 0 : index
    %c0_14 = arith.constant 0 : index
    %15 = vector.load %arg4[%c0_12, %c0_13, %c0_14] : memref<9x1x128xbf16, #tpu.memory_space<vmem>>, vector<9x1x128xbf16>
    %c0_15 = arith.constant 0 : index
    %c0_16 = arith.constant 0 : index
    %16 = vector.load %arg3[%c0_15, %c0_16] : memref<32x128xf32, #tpu.memory_space<vmem>>, vector<32x128xf32>
    %17 = arith.truncf %16 : vector<32x128xf32> to vector<32x128xbf16>
    %18 = tpu.concatenate %14, %17 in 0 : vector<32x128xbf16>, vector<32x128xbf16> -> vector<64x128xbf16>
    %19 = tpu.concatenate %18, %18 in 1 : vector<64x128xbf16>, vector<64x128xbf16> -> vector<64x256xbf16>
    %cst_17 = arith.constant 0.000000e+00 : f32
    %20 = vector.broadcast %cst_17 : f32 to vector<32x128xf32>
    %21 = vector.extract_strided_slice %19 {offsets = [0, 119], sizes = [64, 128], strides = [1, 1]} : vector<64x256xbf16> to vector<64x128xbf16>
    %22 = vector.extract_strided_slice %15 {offsets = [0, 0, 0], sizes = [1, 1, 128], strides = [1, 1, 1]} : vector<9x1x128xbf16> to vector<1x1x128xbf16>
    %23 = vector.shape_cast %22 : vector<1x1x128xbf16> to vector<1x128xbf16>
    %24 = vector.broadcast %23 : vector<1x128xbf16> to vector<64x128xbf16>
    %25 = arith.mulf %21, %24 : vector<64x128xbf16>
    %c0_18 = arith.constant 0 : index
    %c0_19 = arith.constant 0 : index
    %26 = vector.load %arg8[%c0_18, %c0_19] : memref<32x576xbf16, #tpu.memory_space<vmem>>, vector<32x64xbf16>
    %cst_20 = arith.constant dense<0.000000e+00> : vector<32x128xf32>
    %27 = tpu.matmul %26, %25, %cst_20 {dimension_numbers = #tpu.dot_dimension_numbers<[1], [0], [0], [1], [0, 0, 1, 1], [], []>} : vector<32x64xbf16>, vector<64x128xbf16>, vector<32x128xf32> -> vector<32x128xf32>
    %28 = arith.addf %20, %27 : vector<32x128xf32>
    %29 = vector.extract_strided_slice %19 {offsets = [0, 120], sizes = [64, 128], strides = [1, 1]} : vector<64x256xbf16> to vector<64x128xbf16>
    %30 = vector.extract_strided_slice %15 {offsets = [1, 0, 0], sizes = [1, 1, 128], strides = [1, 1, 1]} : vector<9x1x128xbf16> to vector<1x1x128xbf16>
    %31 = vector.shape_cast %30 : vector<1x1x128xbf16> to vector<1x128xbf16>
    %32 = vector.broadcast %31 : vector<1x128xbf16> to vector<64x128xbf16>
    %33 = arith.mulf %29, %32 : vector<64x128xbf16>
    %c0_21 = arith.constant 0 : index
    %c64 = arith.constant 64 : index
    %34 = vector.load %arg8[%c0_21, %c64] : memref<32x576xbf16, #tpu.memory_space<vmem>>, vector<32x64xbf16>
    %cst_22 = arith.constant dense<0.000000e+00> : vector<32x128xf32>
    %35 = tpu.matmul %34, %33, %cst_22 {dimension_numbers = #tpu.dot_dimension_numbers<[1], [0], [0], [1], [0, 0, 1, 1], [], []>} : vector<32x64xbf16>, vector<64x128xbf16>, vector<32x128xf32> -> vector<32x128xf32>
    %36 = arith.addf %28, %35 : vector<32x128xf32>
    %37 = vector.extract_strided_slice %19 {offsets = [0, 121], sizes = [64, 128], strides = [1, 1]} : vector<64x256xbf16> to vector<64x128xbf16>
    %38 = vector.extract_strided_slice %15 {offsets = [2, 0, 0], sizes = [1, 1, 128], strides = [1, 1, 1]} : vector<9x1x128xbf16> to vector<1x1x128xbf16>
    %39 = vector.shape_cast %38 : vector<1x1x128xbf16> to vector<1x128xbf16>
    %40 = vector.broadcast %39 : vector<1x128xbf16> to vector<64x128xbf16>
    %41 = arith.mulf %37, %40 : vector<64x128xbf16>
    %c0_23 = arith.constant 0 : index
    %c128 = arith.constant 128 : index
    %42 = vector.load %arg8[%c0_23, %c128] : memref<32x576xbf16, #tpu.memory_space<vmem>>, vector<32x64xbf16>
    %cst_24 = arith.constant dense<0.000000e+00> : vector<32x128xf32>
    %43 = tpu.matmul %42, %41, %cst_24 {dimension_numbers = #tpu.dot_dimension_numbers<[1], [0], [0], [1], [0, 0, 1, 1], [], []>} : vector<32x64xbf16>, vector<64x128xbf16>, vector<32x128xf32> -> vector<32x128xf32>
    %44 = arith.addf %36, %43 : vector<32x128xf32>
    %45 = vector.extract_strided_slice %19 {offsets = [0, 127], sizes = [64, 128], strides = [1, 1]} : vector<64x256xbf16> to vector<64x128xbf16>
    %46 = vector.extract_strided_slice %15 {offsets = [3, 0, 0], sizes = [1, 1, 128], strides = [1, 1, 1]} : vector<9x1x128xbf16> to vector<1x1x128xbf16>
    %47 = vector.shape_cast %46 : vector<1x1x128xbf16> to vector<1x128xbf16>
    %48 = vector.broadcast %47 : vector<1x128xbf16> to vector<64x128xbf16>
    %49 = arith.mulf %45, %48 : vector<64x128xbf16>
    %c0_25 = arith.constant 0 : index
    %c192 = arith.constant 192 : index
    %50 = vector.load %arg8[%c0_25, %c192] : memref<32x576xbf16, #tpu.memory_space<vmem>>, vector<32x64xbf16>
    %cst_26 = arith.constant dense<0.000000e+00> : vector<32x128xf32>
    %51 = tpu.matmul %50, %49, %cst_26 {dimension_numbers = #tpu.dot_dimension_numbers<[1], [0], [0], [1], [0, 0, 1, 1], [], []>} : vector<32x64xbf16>, vector<64x128xbf16>, vector<32x128xf32> -> vector<32x128xf32>
    %52 = arith.addf %44, %51 : vector<32x128xf32>
    %53 = vector.extract_strided_slice %19 {offsets = [0, 0], sizes = [64, 128], strides = [1, 1]} : vector<64x256xbf16> to vector<64x128xbf16>
    %54 = vector.extract_strided_slice %15 {offsets = [4, 0, 0], sizes = [1, 1, 128], strides = [1, 1, 1]} : vector<9x1x128xbf16> to vector<1x1x128xbf16>
    %55 = vector.shape_cast %54 : vector<1x1x128xbf16> to vector<1x128xbf16>
    %56 = vector.broadcast %55 : vector<1x128xbf16> to vector<64x128xbf16>
    %57 = arith.mulf %53, %56 : vector<64x128xbf16>
    %c0_27 = arith.constant 0 : index
    %c256 = arith.constant 256 : index
    %58 = vector.load %arg8[%c0_27, %c256] : memref<32x576xbf16, #tpu.memory_space<vmem>>, vector<32x64xbf16>
    %cst_28 = arith.constant dense<0.000000e+00> : vector<32x128xf32>
    %59 = tpu.matmul %58, %57, %cst_28 {dimension_numbers = #tpu.dot_dimension_numbers<[1], [0], [0], [1], [0, 0, 1, 1], [], []>} : vector<32x64xbf16>, vector<64x128xbf16>, vector<32x128xf32> -> vector<32x128xf32>
    %60 = arith.addf %52, %59 : vector<32x128xf32>
    %61 = vector.extract_strided_slice %19 {offsets = [0, 1], sizes = [64, 128], strides = [1, 1]} : vector<64x256xbf16> to vector<64x128xbf16>
    %62 = vector.extract_strided_slice %15 {offsets = [5, 0, 0], sizes = [1, 1, 128], strides = [1, 1, 1]} : vector<9x1x128xbf16> to vector<1x1x128xbf16>
    %63 = vector.shape_cast %62 : vector<1x1x128xbf16> to vector<1x128xbf16>
    %64 = vector.broadcast %63 : vector<1x128xbf16> to vector<64x128xbf16>
    %65 = arith.mulf %61, %64 : vector<64x128xbf16>
    %c0_29 = arith.constant 0 : index
    %c320 = arith.constant 320 : index
    %66 = vector.load %arg8[%c0_29, %c320] : memref<32x576xbf16, #tpu.memory_space<vmem>>, vector<32x64xbf16>
    %cst_30 = arith.constant dense<0.000000e+00> : vector<32x128xf32>
    %67 = tpu.matmul %66, %65, %cst_30 {dimension_numbers = #tpu.dot_dimension_numbers<[1], [0], [0], [1], [0, 0, 1, 1], [], []>} : vector<32x64xbf16>, vector<64x128xbf16>, vector<32x128xf32> -> vector<32x128xf32>
    %68 = arith.addf %60, %67 : vector<32x128xf32>
    %69 = vector.extract_strided_slice %19 {offsets = [0, 7], sizes = [64, 128], strides = [1, 1]} : vector<64x256xbf16> to vector<64x128xbf16>
    %70 = vector.extract_strided_slice %15 {offsets = [6, 0, 0], sizes = [1, 1, 128], strides = [1, 1, 1]} : vector<9x1x128xbf16> to vector<1x1x128xbf16>
    %71 = vector.shape_cast %70 : vector<1x1x128xbf16> to vector<1x128xbf16>
    %72 = vector.broadcast %71 : vector<1x128xbf16> to vector<64x128xbf16>
    %73 = arith.mulf %69, %72 : vector<64x128xbf16>
    %c0_31 = arith.constant 0 : index
    %c384 = arith.constant 384 : index
    %74 = vector.load %arg8[%c0_31, %c384] : memref<32x576xbf16, #tpu.memory_space<vmem>>, vector<32x64xbf16>
    %cst_32 = arith.constant dense<0.000000e+00> : vector<32x128xf32>
    %75 = tpu.matmul %74, %73, %cst_32 {dimension_numbers = #tpu.dot_dimension_numbers<[1], [0], [0], [1], [0, 0, 1, 1], [], []>} : vector<32x64xbf16>, vector<64x128xbf16>, vector<32x128xf32> -> vector<32x128xf32>
    %76 = arith.addf %68, %75 : vector<32x128xf32>
    %77 = vector.extract_strided_slice %19 {offsets = [0, 8], sizes = [64, 128], strides = [1, 1]} : vector<64x256xbf16> to vector<64x128xbf16>
    %78 = vector.extract_strided_slice %15 {offsets = [7, 0, 0], sizes = [1, 1, 128], strides = [1, 1, 1]} : vector<9x1x128xbf16> to vector<1x1x128xbf16>
    %79 = vector.shape_cast %78 : vector<1x1x128xbf16> to vector<1x128xbf16>
    %80 = vector.broadcast %79 : vector<1x128xbf16> to vector<64x128xbf16>
    %81 = arith.mulf %77, %80 : vector<64x128xbf16>
    %c0_33 = arith.constant 0 : index
    %c448 = arith.constant 448 : index
    %82 = vector.load %arg8[%c0_33, %c448] : memref<32x576xbf16, #tpu.memory_space<vmem>>, vector<32x64xbf16>
    %cst_34 = arith.constant dense<0.000000e+00> : vector<32x128xf32>
    %83 = tpu.matmul %82, %81, %cst_34 {dimension_numbers = #tpu.dot_dimension_numbers<[1], [0], [0], [1], [0, 0, 1, 1], [], []>} : vector<32x64xbf16>, vector<64x128xbf16>, vector<32x128xf32> -> vector<32x128xf32>
    %84 = arith.addf %76, %83 : vector<32x128xf32>
    %85 = vector.extract_strided_slice %19 {offsets = [0, 9], sizes = [64, 128], strides = [1, 1]} : vector<64x256xbf16> to vector<64x128xbf16>
    %86 = vector.extract_strided_slice %15 {offsets = [8, 0, 0], sizes = [1, 1, 128], strides = [1, 1, 1]} : vector<9x1x128xbf16> to vector<1x1x128xbf16>
    %87 = vector.shape_cast %86 : vector<1x1x128xbf16> to vector<1x128xbf16>
    %88 = vector.broadcast %87 : vector<1x128xbf16> to vector<64x128xbf16>
    %89 = arith.mulf %85, %88 : vector<64x128xbf16>
    %c0_35 = arith.constant 0 : index
    %c512 = arith.constant 512 : index
    %90 = vector.load %arg8[%c0_35, %c512] : memref<32x576xbf16, #tpu.memory_space<vmem>>, vector<32x64xbf16>
    %cst_36 = arith.constant dense<0.000000e+00> : vector<32x128xf32>
    %91 = tpu.matmul %90, %89, %cst_36 {dimension_numbers = #tpu.dot_dimension_numbers<[1], [0], [0], [1], [0, 0, 1, 1], [], []>} : vector<32x64xbf16>, vector<64x128xbf16>, vector<32x128xf32> -> vector<32x128xf32>
    %92 = arith.addf %84, %91 : vector<32x128xf32>
    %c0_37 = arith.constant 0 : index
    %c0_38 = arith.constant 0 : index
    %93 = vector.load %arg10[%c0_37, %c0_38] : memref<32x1xf32, #tpu.memory_space<vmem>>, vector<32x1xf32>
    %94 = vector.broadcast %93 : vector<32x1xf32> to vector<32x128xf32>
    %95 = arith.mulf %16, %94 : vector<32x128xf32>
    %96 = arith.addf %95, %92 : vector<32x128xf32>
    %c0_39 = arith.constant 0 : index
    %c0_40 = arith.constant 0 : index
    %97 = vector.load %arg9[%c0_39, %c0_40] : memref<32x1xf32, #tpu.memory_space<vmem>>, vector<32x1xf32>
    %98 = vector.broadcast %97 : vector<32x1xf32> to vector<32x128xf32>
    %99 = arith.addf %96, %98 : vector<32x128xf32>
    %100 = math.tanh %99 : vector<32x128xf32>
    %c0_41 = arith.constant 0 : index
    %c0_42 = arith.constant 0 : index
    %101 = vector.load %arg15[%c0_41, %c0_42] : memref<32x128xf32, #tpu.memory_space<vmem>>, vector<32x128xf32>
    tpu.vector_store %arg15[%c0_41, %c0_42], %100 {strides = array<i32>} : memref<32x128xf32, #tpu.memory_space<vmem>>, vector<32x128xf32>,
    %102 = arith.truncf %100 : vector<32x128xf32> to vector<32x128xbf16>
    %103 = tpu.concatenate %102, %102 in 1 : vector<32x128xbf16>, vector<32x128xbf16> -> vector<32x256xbf16>
    %cst_43 = arith.constant 0.000000e+00 : f32
    %104 = vector.broadcast %cst_43 : f32 to vector<32x128xf32>
    %105 = vector.extract_strided_slice %103 {offsets = [0, 119], sizes = [32, 128], strides = [1, 1]} : vector<32x256xbf16> to vector<32x128xbf16>
    %106 = vector.extract_strided_slice %15 {offsets = [0, 0, 0], sizes = [1, 1, 128], strides = [1, 1, 1]} : vector<9x1x128xbf16> to vector<1x1x128xbf16>
    %107 = vector.shape_cast %106 : vector<1x1x128xbf16> to vector<1x128xbf16>
    %108 = vector.broadcast %107 : vector<1x128xbf16> to vector<32x128xbf16>
    %109 = arith.mulf %105, %108 : vector<32x128xbf16>
    %c0_44 = arith.constant 0 : index
    %c0_45 = arith.constant 0 : index
    %110 = vector.load %arg11[%c0_44, %c0_45] : memref<32x288xbf16, #tpu.memory_space<vmem>>, vector<32x32xbf16>
    %cst_46 = arith.constant dense<0.000000e+00> : vector<32x128xf32>
    %111 = tpu.matmul %110, %109, %cst_46 {dimension_numbers = #tpu.dot_dimension_numbers<[1], [0], [0], [1], [0, 0, 1, 1], [], []>} : vector<32x32xbf16>, vector<32x128xbf16>, vector<32x128xf32> -> vector<32x128xf32>
    %112 = arith.addf %104, %111 : vector<32x128xf32>
    %113 = vector.extract_strided_slice %103 {offsets = [0, 120], sizes = [32, 128], strides = [1, 1]} : vector<32x256xbf16> to vector<32x128xbf16>
    %114 = vector.extract_strided_slice %15 {offsets = [1, 0, 0], sizes = [1, 1, 128], strides = [1, 1, 1]} : vector<9x1x128xbf16> to vector<1x1x128xbf16>
    %115 = vector.shape_cast %114 : vector<1x1x128xbf16> to vector<1x128xbf16>
    %116 = vector.broadcast %115 : vector<1x128xbf16> to vector<32x128xbf16>
    %117 = arith.mulf %113, %116 : vector<32x128xbf16>
    %c0_47 = arith.constant 0 : index
    %c32 = arith.constant 32 : index
    %118 = vector.load %arg11[%c0_47, %c32] : memref<32x288xbf16, #tpu.memory_space<vmem>>, vector<32x32xbf16>
    %cst_48 = arith.constant dense<0.000000e+00> : vector<32x128xf32>
    %119 = tpu.matmul %118, %117, %cst_48 {dimension_numbers = #tpu.dot_dimension_numbers<[1], [0], [0], [1], [0, 0, 1, 1], [], []>} : vector<32x32xbf16>, vector<32x128xbf16>, vector<32x128xf32> -> vector<32x128xf32>
    %120 = arith.addf %112, %119 : vector<32x128xf32>
    %121 = vector.extract_strided_slice %103 {offsets = [0, 121], sizes = [32, 128], strides = [1, 1]} : vector<32x256xbf16> to vector<32x128xbf16>
    %122 = vector.extract_strided_slice %15 {offsets = [2, 0, 0], sizes = [1, 1, 128], strides = [1, 1, 1]} : vector<9x1x128xbf16> to vector<1x1x128xbf16>
    %123 = vector.shape_cast %122 : vector<1x1x128xbf16> to vector<1x128xbf16>
    %124 = vector.broadcast %123 : vector<1x128xbf16> to vector<32x128xbf16>
    %125 = arith.mulf %121, %124 : vector<32x128xbf16>
    %c0_49 = arith.constant 0 : index
    %c64_50 = arith.constant 64 : index
    %126 = vector.load %arg11[%c0_49, %c64_50] : memref<32x288xbf16, #tpu.memory_space<vmem>>, vector<32x32xbf16>
    %cst_51 = arith.constant dense<0.000000e+00> : vector<32x128xf32>
    %127 = tpu.matmul %126, %125, %cst_51 {dimension_numbers = #tpu.dot_dimension_numbers<[1], [0], [0], [1], [0, 0, 1, 1], [], []>} : vector<32x32xbf16>, vector<32x128xbf16>, vector<32x128xf32> -> vector<32x128xf32>
    %128 = arith.addf %120, %127 : vector<32x128xf32>
    %129 = vector.extract_strided_slice %103 {offsets = [0, 127], sizes = [32, 128], strides = [1, 1]} : vector<32x256xbf16> to vector<32x128xbf16>
    %130 = vector.extract_strided_slice %15 {offsets = [3, 0, 0], sizes = [1, 1, 128], strides = [1, 1, 1]} : vector<9x1x128xbf16> to vector<1x1x128xbf16>
    %131 = vector.shape_cast %130 : vector<1x1x128xbf16> to vector<1x128xbf16>
    %132 = vector.broadcast %131 : vector<1x128xbf16> to vector<32x128xbf16>
    %133 = arith.mulf %129, %132 : vector<32x128xbf16>
    %c0_52 = arith.constant 0 : index
    %c96 = arith.constant 96 : index
    %134 = vector.load %arg11[%c0_52, %c96] : memref<32x288xbf16, #tpu.memory_space<vmem>>, vector<32x32xbf16>
    %cst_53 = arith.constant dense<0.000000e+00> : vector<32x128xf32>
    %135 = tpu.matmul %134, %133, %cst_53 {dimension_numbers = #tpu.dot_dimension_numbers<[1], [0], [0], [1], [0, 0, 1, 1], [], []>} : vector<32x32xbf16>, vector<32x128xbf16>, vector<32x128xf32> -> vector<32x128xf32>
    %136 = arith.addf %128, %135 : vector<32x128xf32>
    %137 = vector.extract_strided_slice %103 {offsets = [0, 0], sizes = [32, 128], strides = [1, 1]} : vector<32x256xbf16> to vector<32x128xbf16>
    %138 = vector.extract_strided_slice %15 {offsets = [4, 0, 0], sizes = [1, 1, 128], strides = [1, 1, 1]} : vector<9x1x128xbf16> to vector<1x1x128xbf16>
    %139 = vector.shape_cast %138 : vector<1x1x128xbf16> to vector<1x128xbf16>
    %140 = vector.broadcast %139 : vector<1x128xbf16> to vector<32x128xbf16>
    %141 = arith.mulf %137, %140 : vector<32x128xbf16>
    %c0_54 = arith.constant 0 : index
    %c128_55 = arith.constant 128 : index
    %142 = vector.load %arg11[%c0_54, %c128_55] : memref<32x288xbf16, #tpu.memory_space<vmem>>, vector<32x32xbf16>
    %cst_56 = arith.constant dense<0.000000e+00> : vector<32x128xf32>
    %143 = tpu.matmul %142, %141, %cst_56 {dimension_numbers = #tpu.dot_dimension_numbers<[1], [0], [0], [1], [0, 0, 1, 1], [], []>} : vector<32x32xbf16>, vector<32x128xbf16>, vector<32x128xf32> -> vector<32x128xf32>
    %144 = arith.addf %136, %143 : vector<32x128xf32>
    %145 = vector.extract_strided_slice %103 {offsets = [0, 1], sizes = [32, 128], strides = [1, 1]} : vector<32x256xbf16> to vector<32x128xbf16>
    %146 = vector.extract_strided_slice %15 {offsets = [5, 0, 0], sizes = [1, 1, 128], strides = [1, 1, 1]} : vector<9x1x128xbf16> to vector<1x1x128xbf16>
    %147 = vector.shape_cast %146 : vector<1x1x128xbf16> to vector<1x128xbf16>
    %148 = vector.broadcast %147 : vector<1x128xbf16> to vector<32x128xbf16>
    %149 = arith.mulf %145, %148 : vector<32x128xbf16>
    %c0_57 = arith.constant 0 : index
    %c160 = arith.constant 160 : index
    %150 = vector.load %arg11[%c0_57, %c160] : memref<32x288xbf16, #tpu.memory_space<vmem>>, vector<32x32xbf16>
    %cst_58 = arith.constant dense<0.000000e+00> : vector<32x128xf32>
    %151 = tpu.matmul %150, %149, %cst_58 {dimension_numbers = #tpu.dot_dimension_numbers<[1], [0], [0], [1], [0, 0, 1, 1], [], []>} : vector<32x32xbf16>, vector<32x128xbf16>, vector<32x128xf32> -> vector<32x128xf32>
    %152 = arith.addf %144, %151 : vector<32x128xf32>
    %153 = vector.extract_strided_slice %103 {offsets = [0, 7], sizes = [32, 128], strides = [1, 1]} : vector<32x256xbf16> to vector<32x128xbf16>
    %154 = vector.extract_strided_slice %15 {offsets = [6, 0, 0], sizes = [1, 1, 128], strides = [1, 1, 1]} : vector<9x1x128xbf16> to vector<1x1x128xbf16>
    %155 = vector.shape_cast %154 : vector<1x1x128xbf16> to vector<1x128xbf16>
    %156 = vector.broadcast %155 : vector<1x128xbf16> to vector<32x128xbf16>
    %157 = arith.mulf %153, %156 : vector<32x128xbf16>
    %c0_59 = arith.constant 0 : index
    %c192_60 = arith.constant 192 : index
    %158 = vector.load %arg11[%c0_59, %c192_60] : memref<32x288xbf16, #tpu.memory_space<vmem>>, vector<32x32xbf16>
    %cst_61 = arith.constant dense<0.000000e+00> : vector<32x128xf32>
    %159 = tpu.matmul %158, %157, %cst_61 {dimension_numbers = #tpu.dot_dimension_numbers<[1], [0], [0], [1], [0, 0, 1, 1], [], []>} : vector<32x32xbf16>, vector<32x128xbf16>, vector<32x128xf32> -> vector<32x128xf32>
    %160 = arith.addf %152, %159 : vector<32x128xf32>
    %161 = vector.extract_strided_slice %103 {offsets = [0, 8], sizes = [32, 128], strides = [1, 1]} : vector<32x256xbf16> to vector<32x128xbf16>
    %162 = vector.extract_strided_slice %15 {offsets = [7, 0, 0], sizes = [1, 1, 128], strides = [1, 1, 1]} : vector<9x1x128xbf16> to vector<1x1x128xbf16>
    %163 = vector.shape_cast %162 : vector<1x1x128xbf16> to vector<1x128xbf16>
    %164 = vector.broadcast %163 : vector<1x128xbf16> to vector<32x128xbf16>
    %165 = arith.mulf %161, %164 : vector<32x128xbf16>
    %c0_62 = arith.constant 0 : index
    %c224 = arith.constant 224 : index
    %166 = vector.load %arg11[%c0_62, %c224] : memref<32x288xbf16, #tpu.memory_space<vmem>>, vector<32x32xbf16>
    %cst_63 = arith.constant dense<0.000000e+00> : vector<32x128xf32>
    %167 = tpu.matmul %166, %165, %cst_63 {dimension_numbers = #tpu.dot_dimension_numbers<[1], [0], [0], [1], [0, 0, 1, 1], [], []>} : vector<32x32xbf16>, vector<32x128xbf16>, vector<32x128xf32> -> vector<32x128xf32>
    %168 = arith.addf %160, %167 : vector<32x128xf32>
    %169 = vector.extract_strided_slice %103 {offsets = [0, 9], sizes = [32, 128], strides = [1, 1]} : vector<32x256xbf16> to vector<32x128xbf16>
    %170 = vector.extract_strided_slice %15 {offsets = [8, 0, 0], sizes = [1, 1, 128], strides = [1, 1, 1]} : vector<9x1x128xbf16> to vector<1x1x128xbf16>
    %171 = vector.shape_cast %170 : vector<1x1x128xbf16> to vector<1x128xbf16>
    %172 = vector.broadcast %171 : vector<1x128xbf16> to vector<32x128xbf16>
    %173 = arith.mulf %169, %172 : vector<32x128xbf16>
    %c0_64 = arith.constant 0 : index
    %c256_65 = arith.constant 256 : index
    %174 = vector.load %arg11[%c0_64, %c256_65] : memref<32x288xbf16, #tpu.memory_space<vmem>>, vector<32x32xbf16>
    %cst_66 = arith.constant dense<0.000000e+00> : vector<32x128xf32>
    %175 = tpu.matmul %174, %173, %cst_66 {dimension_numbers = #tpu.dot_dimension_numbers<[1], [0], [0], [1], [0, 0, 1, 1], [], []>} : vector<32x32xbf16>, vector<32x128xbf16>, vector<32x128xf32> -> vector<32x128xf32>
    %176 = arith.addf %168, %175 : vector<32x128xf32>
    %c0_67 = arith.constant 0 : index
    %c0_68 = arith.constant 0 : index
    %177 = vector.load %arg12[%c0_67, %c0_68] : memref<32x1xf32, #tpu.memory_space<vmem>>, vector<32x1xf32>
    %178 = vector.broadcast %177 : vector<32x1xf32> to vector<32x128xf32>
    %179 = arith.addf %176, %178 : vector<32x128xf32>
    %cst_69 = arith.constant 0.000000e+00 : f32
    %180 = vector.broadcast %cst_69 : f32 to vector<32x128xf32>
    %181 = arith.maximumf %179, %180 : vector<32x128xf32>
    %182 = arith.truncf %181 : vector<32x128xf32> to vector<32x128xbf16>
    %c0_70 = arith.constant 0 : index
    %c0_71 = arith.constant 0 : index
    %183 = vector.load %arg13[%c0_70, %c0_71] : memref<32x128xbf16, #tpu.memory_space<vmem>>, vector<32x128xbf16>
    tpu.vector_store %arg13[%c0_70, %c0_71], %182 {strides = array<i32>} : memref<32x128xbf16, #tpu.memory_space<vmem>>, vector<32x128xbf16>,
    return
  }
  func.func @transform_0(%arg0: i32) -> (i32, i32) {
    %c0_i32 = arith.constant 0 : i32
    %c0_i32_0 = arith.constant 0 : i32
    return %c0_i32, %arg0 : i32, i32
  }
  func.func @transform_1(%arg0: i32) -> (i32, i32) {
    %c0_i32 = arith.constant 0 : i32
    %c0_i32_0 = arith.constant 0 : i32
    return %c0_i32, %arg0 : i32, i32
  }
  func.func @transform_2(%arg0: i32) -> (i32, i32) {
    %c0_i32 = arith.constant 0 : i32
    %c0_i32_0 = arith.constant 0 : i32
    return %c0_i32, %arg0 : i32, i32
  }
  func.func @transform_3(%arg0: i32) -> (i32, i32, i32) {
    %c0_i32 = arith.constant 0 : i32
    %c0_i32_0 = arith.constant 0 : i32
    %c0_i32_1 = arith.constant 0 : i32
    %c0_i32_2 = arith.constant 0 : i32
    return %c0_i32, %c0_i32_0, %c0_i32_1 : i32, i32, i32
  }
  func.func @transform_4(%arg0: i32) -> (i32, i32) {
    %c0_i32 = arith.constant 0 : i32
    %c0_i32_0 = arith.constant 0 : i32
    %c0_i32_1 = arith.constant 0 : i32
    return %c0_i32, %c0_i32_0 : i32, i32
  }
  func.func @transform_5(%arg0: i32) -> (i32, i32) {
    %c0_i32 = arith.constant 0 : i32
    %c0_i32_0 = arith.constant 0 : i32
    %c0_i32_1 = arith.constant 0 : i32
    return %c0_i32, %c0_i32_0 : i32, i32
  }
  func.func @transform_6(%arg0: i32) -> (i32, i32) {
    %c0_i32 = arith.constant 0 : i32
    %c0_i32_0 = arith.constant 0 : i32
    %c0_i32_1 = arith.constant 0 : i32
    return %c0_i32, %c0_i32_0 : i32, i32
  }
  func.func @transform_7(%arg0: i32) -> (i32, i32) {
    %c0_i32 = arith.constant 0 : i32
    %c0_i32_0 = arith.constant 0 : i32
    %c0_i32_1 = arith.constant 0 : i32
    return %c0_i32, %c0_i32_0 : i32, i32
  }
  func.func @transform_8(%arg0: i32) -> (i32, i32) {
    %c0_i32 = arith.constant 0 : i32
    %c0_i32_0 = arith.constant 0 : i32
    %c0_i32_1 = arith.constant 0 : i32
    return %c0_i32, %c0_i32_0 : i32, i32
  }
  func.func @transform_9(%arg0: i32) -> (i32, i32) {
    %c0_i32 = arith.constant 0 : i32
    %c0_i32_0 = arith.constant 0 : i32
    %c0_i32_1 = arith.constant 0 : i32
    return %c0_i32, %c0_i32_0 : i32, i32
  }
  func.func @transform_10(%arg0: i32) -> (i32, i32) {
    %c0_i32 = arith.constant 0 : i32
    %c0_i32_0 = arith.constant 0 : i32
    %c0_i32_1 = arith.constant 0 : i32
    return %c0_i32, %c0_i32_0 : i32, i32
  }
  func.func @transform_11(%arg0: i32) -> (i32, i32) {
    %c0_i32 = arith.constant 0 : i32
    %c0_i32_0 = arith.constant 0 : i32
    %c0_i32_1 = arith.constant 0 : i32
    return %c0_i32, %c0_i32_0 : i32, i32
  }
  func.func @transform_12(%arg0: i32) -> (i32, i32) {
    %c0_i32 = arith.constant 0 : i32
    %c0_i32_0 = arith.constant 0 : i32
    return %c0_i32, %arg0 : i32, i32
  }
  func.func @transform_13(%arg0: i32) -> (i32, i32) {
    %c0_i32 = arith.constant 0 : i32
    %c0_i32_0 = arith.constant 0 : i32
    return %c0_i32, %arg0 : i32, i32
  }
  func.func @transform_14(%arg0: i32) -> (i32, i32) {
    %c0_i32 = arith.constant 0 : i32
    %c0_i32_0 = arith.constant 0 : i32
    return %c0_i32, %arg0 : i32, i32
  }
}

</mosaic_0001>

<llo_original>
// kernel: leaky_recurrent_conv_layer_forward.1
$region0: #{leaky_recurrent_conv_layer_forward.1}
  #allocation0 [shape = 'u32[]', space=smem, size = 0x4, offset = 0x4, fixed_abs, tag = 'smem constant byte address 0x4 - core index']
  #allocation1 [shape = 'u32[144,128]{1,0:T(1,128)}', space=vmem, size = 0x12000, scoped, tag = 'internal scratch']
  %s0 = inlined_call_operand.vmem [shape: bf16[48,128], index: 0, kind: input, shape index: {}]
  %s1 = inlined_call_operand.vmem [shape: f32[32,128], index: 1, kind: input, shape index: {}, may-alias: {1,2}]
  %s2 = inlined_call_operand.vmem [shape: f32[32,128], index: 2, kind: input, shape index: {}, may-alias: {1,2}]
  %s3 = inlined_call_operand.vmem [shape: bf16[9,1,128], index: 3, kind: input, shape index: {}]
  %s4 = inlined_call_operand.vmem [shape: bf16[32,48], index: 4, kind: input, shape index: {}]
  %s5 = inlined_call_operand.vmem [shape: f32[32,1], index: 5, kind: input, shape index: {}]
  %s6 = inlined_call_operand.vmem [shape: f32[32,1], index: 6, kind: input, shape index: {}]
  %s7 = inlined_call_operand.vmem [shape: bf16[32,576], index: 7, kind: input, shape index: {}]
  %s8 = inlined_call_operand.vmem [shape: f32[32,1], index: 8, kind: input, shape index: {}]
  %s9 = inlined_call_operand.vmem [shape: f32[32,1], index: 9, kind: input, shape index: {}]
  %s10 = inlined_call_operand.vmem [shape: bf16[32,288], index: 10, kind: input, shape index: {}]
  %s11 = inlined_call_operand.vmem [shape: f32[32,1], index: 11, kind: input, shape index: {}]
  %s12 = inlined_call_operand.vmem [shape: bf16[32,128], index: 12, kind: output, shape index: {0}]
  %s13 = inlined_call_operand.vmem [shape: f32[32,128], index: 13, kind: output, shape index: {1}]
  %s14 = inlined_call_operand.vmem [shape: f32[32,128], index: 14, kind: output, shape index: {2}]
  %15 = xla_tuple %s12, %s13, %s14
  %s16 = sld [smem:[#allocation0]]
  $region74: #{leaky_recurrent_conv_layer_forward.1} parent=0
    _
  %s18 = ssub.s32 1, %s16
  %s19 = scalar_select 0, %s18, %s16
  // Predicated region
  $region2: #{leaky_recurrent_conv_layer_forward.1} parent=0 // pred_check
    _
  $region3: #{leaky_recurrent_conv_layer_forward.1} parent=0 // pred_check_branch
    %21 = sbr.rel (0) target = $region5
  $region4: #{leaky_recurrent_conv_layer_forward.1} parent=0 // pred_region
    _
  $region5: #{leaky_recurrent_conv_layer_forward.1} parent=0 // pred_fallthru
    _
  // Predicated region
  $region6: #{leaky_recurrent_conv_layer_forward.1} parent=0 // pred_check
    _
  $region7: #{leaky_recurrent_conv_layer_forward.1} parent=0 // pred_check_branch
    %23 = sbr.rel (0) target = $region9
  $region8: #{leaky_recurrent_conv_layer_forward.1} parent=0 // pred_region
    _
  $region9: #{leaky_recurrent_conv_layer_forward.1} parent=0 // pred_fallthru
    _
  // Predicated region
  $region10: #{leaky_recurrent_conv_layer_forward.1} parent=0 // pred_check
    _
  $region11: #{leaky_recurrent_conv_layer_forward.1} parent=0 // pred_check_branch
    %25 = sbr.rel (0) target = $region13
  $region12: #{leaky_recurrent_conv_layer_forward.1} parent=0 // pred_region
    _
  $region13: #{leaky_recurrent_conv_layer_forward.1} parent=0 // pred_fallthru
    _
  // Predicated region
  $region14: #{leaky_recurrent_conv_layer_forward.1} parent=0 // pred_check
    _
  $region15: #{leaky_recurrent_conv_layer_forward.1} parent=0 // pred_check_branch
    %27 = sbr.rel (0) target = $region17
  $region16: #{leaky_recurrent_conv_layer_forward.1} parent=0 // pred_region
    _
  $region17: #{leaky_recurrent_conv_layer_forward.1} parent=0 // pred_fallthru
    _
  // Predicated region
  $region18: #{leaky_recurrent_conv_layer_forward.1} parent=0 // pred_check
    _
  $region19: #{leaky_recurrent_conv_layer_forward.1} parent=0 // pred_check_branch
    %29 = sbr.rel (0) target = $region21
  $region20: #{leaky_recurrent_conv_layer_forward.1} parent=0 // pred_region
    _
  $region21: #{leaky_recurrent_conv_layer_forward.1} parent=0 // pred_fallthru
    _
  // Predicated region
  $region22: #{leaky_recurrent_conv_layer_forward.1} parent=0 // pred_check
    _
  $region23: #{leaky_recurrent_conv_layer_forward.1} parent=0 // pred_check_branch
    %31 = sbr.rel (0) target = $region25
  $region24: #{leaky_recurrent_conv_layer_forward.1} parent=0 // pred_region
    _
  $region25: #{leaky_recurrent_conv_layer_forward.1} parent=0 // pred_fallthru
    _
  // Predicated region
  $region26: #{leaky_recurrent_conv_layer_forward.1} parent=0 // pred_check
    _
  $region27: #{leaky_recurrent_conv_layer_forward.1} parent=0 // pred_check_branch
    %33 = sbr.rel (0) target = $region29
  $region28: #{leaky_recurrent_conv_layer_forward.1} parent=0 // pred_region
    _
  $region29: #{leaky_recurrent_conv_layer_forward.1} parent=0 // pred_fallthru
    _
  // Predicated region
  $region30: #{leaky_recurrent_conv_layer_forward.1} parent=0 // pred_check
    _
  $region31: #{leaky_recurrent_conv_layer_forward.1} parent=0 // pred_check_branch
    %35 = sbr.rel (0) target = $region33
  $region32: #{leaky_recurrent_conv_layer_forward.1} parent=0 // pred_region
    _
  $region33: #{leaky_recurrent_conv_layer_forward.1} parent=0 // pred_fallthru
    _
  // Predicated region
  $region34: #{leaky_recurrent_conv_layer_forward.1} parent=0 // pred_check
    _
  $region35: #{leaky_recurrent_conv_layer_forward.1} parent=0 // pred_check_branch
    %37 = sbr.rel (0) target = $region37
  $region36: #{leaky_recurrent_conv_layer_forward.1} parent=0 // pred_region
    _
  $region37: #{leaky_recurrent_conv_layer_forward.1} parent=0 // pred_fallthru
    _
  // Predicated region
  $region38: #{leaky_recurrent_conv_layer_forward.1} parent=0 // pred_check
    _
  $region39: #{leaky_recurrent_conv_layer_forward.1} parent=0 // pred_check_branch
    %39 = sbr.rel (0) target = $region41
  $region40: #{leaky_recurrent_conv_layer_forward.1} parent=0 // pred_region
    _
  $region41: #{leaky_recurrent_conv_layer_forward.1} parent=0 // pred_fallthru
    _
  // Predicated region
  $region42: #{leaky_recurrent_conv_layer_forward.1} parent=0 // pred_check
    _
  $region43: #{leaky_recurrent_conv_layer_forward.1} parent=0 // pred_check_branch
    %41 = sbr.rel (0) target = $region45
  $region44: #{leaky_recurrent_conv_layer_forward.1} parent=0 // pred_region
    _
  $region45: #{leaky_recurrent_conv_layer_forward.1} parent=0 // pred_fallthru
    _
  // Predicated region
  $region46: #{leaky_recurrent_conv_layer_forward.1} parent=0 // pred_check
    _
  $region47: #{leaky_recurrent_conv_layer_forward.1} parent=0 // pred_check_branch
    %43 = sbr.rel (0) target = $region49
  $region48: #{leaky_recurrent_conv_layer_forward.1} parent=0 // pred_region
    _
  $region49: #{leaky_recurrent_conv_layer_forward.1} parent=0 // pred_fallthru
    _
  %v45 = vld [vmem:[%s4] sm:$0xf]
  %v46 = vld [vmem:[%s4 + $0x4] sm:$0xf]
  %v47 = vld [vmem:[%s4 + $0x8] sm:$0xf]
  %v48 = vld [vmem:[%s4 + $0xc] sm:$0xf]
  %v49 = vld [vmem:[%s0] sm:$0xf]
  %v50 = vld [vmem:[%s0 + $0x4] sm:$0xf]
  %v51 = vld [vmem:[%s0 + $0x8] sm:$0xf]
  %v52 = vld [vmem:[%s0 + $0xc] sm:$0xf]
  %v53 = vld [vmem:[%s0 + $0x10] sm:$0xf]
  %v54 = vld [vmem:[%s0 + $0x14] sm:$0xf]
  %v59 = vunpack.c.l.b16 %v45
  %v60 = vunpack.c.l.b16 %v46
  %v61 = vunpack.c.l.b16 %v47
  %v62 = vunpack.c.l.b16 %v48
  %v63 = vpack.c.b16 %v60, %v59
  %v64 = vpack.c.b16 %v62, %v61
  %v71 = vunpack.c.l.b16 %v49
  %v72 = vunpack.c.l.b16 %v50
  %v73 = vunpack.c.l.b16 %v51
  %v74 = vunpack.c.l.b16 %v52
  %v75 = vunpack.c.l.b16 %v53
  %v76 = vunpack.c.l.b16 %v54
  %v77 = vpack.c.b16 %v72, %v71
  %v78 = vpack.c.b16 %v74, %v73
  %v79 = vpack.c.b16 %v76, %v75
  %vm83 = vcmask 392192
  %v85 = vsel %vm83, %v63, 0
  %v88 = vsel %vm83, %v64, 0
  %90 = vmatprep.subr.bf16.mxu0 0
  %91 = vmatpush1.bf16.msra.mxu0 %v77
  %92 = vmatprep.subr.bf16.mxu0 0
  %93 = vmatpush1.bf16.msra.mxu0 %v78
  %94 = vmatprep.subr.bf16.mxu0 0
  %95 = vmatpush1.bf16.msra.mxu0 %v79
  %96 = vmatprep.subr.bf16.mxu0 0
  %97 = vmatpush1.bf16.msra.mxu0 0
  %98 = vmatprep.subr.bf16.mxu0 0
  %99 = vmatpush1.bf16.msra.mxu0 0
  %100 = vmatprep.subr.bf16.mxu0 0
  %101 = vmatpush1.bf16.msra.mxu0 0
  %102 = vmatprep.subr.bf16.mxu0 0
  %103 = vmatpush1.bf16.msra.mxu0 0
  %104 = vmatprep.subr.bf16.mxu0 0
  %105 = vmatpush1.bf16.msra.mxu0 0
  %106 = vmatprep.subr.bf16.mxu0 0
  %107 = vmatpush1.bf16.msra.mxu0 0
  %108 = vmatprep.subr.bf16.mxu0 0
  %109 = vmatpush1.bf16.msra.mxu0 0
  %110 = vmatprep.subr.bf16.mxu0 0
  %111 = vmatpush1.bf16.msra.mxu0 0
  %112 = vmatprep.subr.bf16.mxu0 0
  %113 = vmatpush1.bf16.msra.mxu0 0
  %114 = vmatprep.subr.bf16.mxu0 0
  %115 = vmatpush1.bf16.msra.mxu0 0
  %116 = vmatprep.subr.bf16.mxu0 0
  %117 = vmatpush1.bf16.msra.mxu0 0
  %118 = vmatprep.subr.bf16.mxu0 0
  %119 = vmatpush1.bf16.msra.mxu0 0
  %120 = vmatprep.subr.bf16.mxu0 0
  %121 = vmatpush1.bf16.msra.mxu0 0
  %122 = vmatprep.mubr.bf16.mxu0 0
  %123 = vmatmul.mubr.bf16.gmra.mrb[0].mxu0 %v85
  %v124 = vpop.f32.mrb[0].mxu0
  %v125 = vadd.f32 0.0, %v124
  %v126 = vpop.f32.mrb[0].mxu0
  %v127 = vpop.f32.mrb[0].mxu0
  %v128 = vadd.f32 0.0, %v127
  %v129 = vpop.f32.mrb[0].mxu0
  %130 = vmatprep.mubr.bf16.mxu0 0
  %131 = vmatmul.mubr.bf16.gmra.mrb[0].mxu0 %v88
  %v132 = vpop.f32.mrb[0].mxu0
  %v133 = vadd.f32 0.0, %v132
  %v134 = vpop.f32.mrb[0].mxu0
  %v135 = vpop.f32.mrb[0].mxu0
  %v136 = vadd.f32 0.0, %v135
  %v137 = vpop.f32.mrb[0].mxu0
  %138 = vdwg.mxu0
  %v139 = vld [vmem:[%s1] sm:$0xff]
  %v140 = vld [vmem:[%s1 + $0x8] sm:$0xff]
  %v141 = vld [vmem:[%s1 + $0x10] sm:$0xff]
  %v142 = vld [vmem:[%s1 + $0x18] sm:$0xff]
  %v143 = vld [vmem:[%s6] sm:$0xff]
  %v144 = vld [vmem:[%s6 + $0x8] sm:$0xff]
  %v145 = vld [vmem:[%s6 + $0x10] sm:$0xff]
  %v146 = vld [vmem:[%s6 + $0x18] sm:$0xff]
  %148 = vset.pattern.permute.xlu0 0
  %149 = vperm.xlu0 %148, %v143
  %v150 = vpop.permute.xlu0 %149
  %153 = vset.pattern.permute.xlu0 0
  %154 = vperm.xlu0 %153, %v144
  %v155 = vpop.permute.xlu0 %154
  %158 = vset.pattern.permute.xlu0 0
  %159 = vperm.xlu0 %158, %v145
  %v160 = vpop.permute.xlu0 %159
  %163 = vset.pattern.permute.xlu0 0
  %164 = vperm.xlu0 %163, %v146
  %v165 = vpop.permute.xlu0 %164
  %v167 = vmul.f32 %v139, %v150
  %v168 = vmul.f32 %v140, %v155
  %v169 = vmul.f32 %v141, %v160
  %v170 = vmul.f32 %v142, %v165
  %v171 = vadd.f32 %v167, %v125
  %v172 = vadd.f32 %v168, %v128
  %v173 = vadd.f32 %v169, %v133
  %v174 = vadd.f32 %v170, %v136
  %v175 = vld [vmem:[%s5] sm:$0xff]
  %v176 = vld [vmem:[%s5 + $0x8] sm:$0xff]
  %v177 = vld [vmem:[%s5 + $0x10] sm:$0xff]
  %v178 = vld [vmem:[%s5 + $0x18] sm:$0xff]
  %180 = vset.pattern.permute.xlu0 0
  %181 = vperm.xlu0 %180, %v175
  %v182 = vpop.permute.xlu0 %181
  %185 = vset.pattern.permute.xlu0 0
  %186 = vperm.xlu0 %185, %v176
  %v187 = vpop.permute.xlu0 %186
  %190 = vset.pattern.permute.xlu0 0
  %191 = vperm.xlu0 %190, %v177
  %v192 = vpop.permute.xlu0 %191
  %195 = vset.pattern.permute.xlu0 0
  %196 = vperm.xlu0 %195, %v178
  %v197 = vpop.permute.xlu0 %196
  %v199 = vadd.f32 %v171, %v182
  %v200 = vadd.f32 %v172, %v187
  %v201 = vadd.f32 %v173, %v192
  %v202 = vadd.f32 %v174, %v197
  %203 = vst [vmem:[%s13] sm:$0xff] %v199
  %204 = vst [vmem:[%s13 + $0x8] sm:$0xff] %v200
  %205 = vst [vmem:[%s13 + $0x10] sm:$0xff] %v201
  %206 = vst [vmem:[%s13 + $0x18] sm:$0xff] %v202
  %v207 = vmax.f32 %v199, 0.0
  %v208 = vmax.f32 %v200, 0.0
  %v209 = vmax.f32 %v201, 0.0
  %v210 = vmax.f32 %v202, 0.0
  %v211 = vpack.c.bf16 %v208, %v207
  %v212 = vpack.c.bf16 %v210, %v209
  %v213 = vld [vmem:[%s3] sm:$0x1]
  %v214 = vld [vmem:[%s3 + $0x1] sm:$0x1]
  %v215 = vld [vmem:[%s3 + $0x2] sm:$0x1]
  %v216 = vld [vmem:[%s3 + $0x3] sm:$0x1]
  %v217 = vld [vmem:[%s3 + $0x4] sm:$0x1]
  %v218 = vld [vmem:[%s3 + $0x5] sm:$0x1]
  %v219 = vld [vmem:[%s3 + $0x6] sm:$0x1]
  %v220 = vld [vmem:[%s3 + $0x7] sm:$0x1]
  %v221 = vld [vmem:[%s3 + $0x8] sm:$0x1]
  %v222 = vld [vmem:[%s2] sm:$0xff]
  %v223 = vld [vmem:[%s2 + $0x8] sm:$0xff]
  %v224 = vld [vmem:[%s2 + $0x10] sm:$0xff]
  %v225 = vld [vmem:[%s2 + $0x18] sm:$0xff]
  %v226 = vpack.c.bf16 %v223, %v222
  %v227 = vpack.c.bf16 %v225, %v224
  %v229 = vpack.i.b16 %v213, %v213
  %v231 = vlaneseq
  %v232 = vshrl.u32 %v231, 7
  %v233 = vsub.s32 0, %v232
  %v234 = vrot.slane %v229, %v233
  %236 = vrot.lane.b32.xlu0 %v234, 119
  %v237 = vpop.permute.xlu0 %236
  %v239 = vmul.bf16 %v211, %v237
  %v240 = vmul.bf16 %v212, %v237
  %v241 = vmul.bf16 %v226, %v237
  %v242 = vmul.bf16 %v227, %v237
  %v243 = vld [vmem:[%s7] sm:$0xf]
  %v244 = vld [vmem:[%s7 + $0x14] sm:$0xf]
  %v245 = vld [vmem:[%s7 + $0x28] sm:$0xf]
  %v246 = vld [vmem:[%s7 + $0x3c] sm:$0xf]
  %v248 = vpack.i.b16 %v214, %v214
  %v250 = vlaneseq
  %v251 = vshrl.u32 %v250, 7
  %v252 = vsub.s32 0, %v251
  %v253 = vrot.slane %v248, %v252
  %255 = vrot.lane.b32.xlu0 %v253, 120
  %v256 = vpop.permute.xlu0 %255
  %v258 = vmul.bf16 %v211, %v256
  %v259 = vmul.bf16 %v212, %v256
  %v260 = vmul.bf16 %v226, %v256
  %v261 = vmul.bf16 %v227, %v256
  %v266 = vunpack.c.l.b16 %v243
  %v267 = vunpack.c.l.b16 %v244
  %v268 = vunpack.c.l.b16 %v245
  %v269 = vunpack.c.l.b16 %v246
  %v270 = vpack.c.b16 %v267, %v266
  %v271 = vpack.c.b16 %v269, %v268
  %272 = vrot.lane.b32.xlu0 %v270, 64
  %v273 = vpop.permute.xlu0 %272
  %274 = vrot.lane.b32.xlu0 %v271, 64
  %v275 = vpop.permute.xlu0 %274
  %280 = vrot.lane.b32.xlu0 %v258, 8
  %v281 = vpop.permute.xlu0 %280
  %282 = vrot.lane.b32.xlu0 %v259, 8
  %v283 = vpop.permute.xlu0 %282
  %284 = vrot.lane.b32.xlu0 %v260, 8
  %v285 = vpop.permute.xlu0 %284
  %286 = vrot.lane.b32.xlu0 %v261, 8
  %v287 = vpop.permute.xlu0 %286
  %vm292 = vcmask 523264
  %v294 = vsel %vm292, %v273, 0
  %v297 = vsel %vm292, %v275, 0
  %299 = vmatprep.subr.bf16.mxu0 0
  %300 = vmatpush1.bf16.msra.mxu0 %v281
  %301 = vmatprep.subr.bf16.mxu0 0
  %302 = vmatpush1.bf16.msra.mxu0 %v283
  %303 = vmatprep.subr.bf16.mxu0 0
  %304 = vmatpush1.bf16.msra.mxu0 %v285
  %305 = vmatprep.subr.bf16.mxu0 0
  %306 = vmatpush1.bf16.msra.mxu0 %v287
  %307 = vmatprep.subr.bf16.mxu0 0
  %308 = vmatpush1.bf16.msra.mxu0 0
  %309 = vmatprep.subr.bf16.mxu0 0
  %310 = vmatpush1.bf16.msra.mxu0 0
  %311 = vmatprep.subr.bf16.mxu0 0
  %312 = vmatpush1.bf16.msra.mxu0 0
  %313 = vmatprep.subr.bf16.mxu0 0
  %314 = vmatpush1.bf16.msra.mxu0 0
  %315 = vmatprep.subr.bf16.mxu0 0
  %316 = vmatpush1.bf16.msra.mxu0 0
  %317 = vmatprep.subr.bf16.mxu0 0
  %318 = vmatpush1.bf16.msra.mxu0 0
  %319 = vmatprep.subr.bf16.mxu0 0
  %320 = vmatpush1.bf16.msra.mxu0 0
  %321 = vmatprep.subr.bf16.mxu0 0
  %322 = vmatpush1.bf16.msra.mxu0 0
  %323 = vmatprep.subr.bf16.mxu0 0
  %324 = vmatpush1.bf16.msra.mxu0 0
  %325 = vmatprep.subr.bf16.mxu0 0
  %326 = vmatpush1.bf16.msra.mxu0 0
  %327 = vmatprep.subr.bf16.mxu0 0
  %328 = vmatpush1.bf16.msra.mxu0 0
  %329 = vmatprep.subr.bf16.mxu0 0
  %330 = vmatpush1.bf16.msra.mxu0 0
  %331 = vmatprep.mubr.bf16.mxu0 0
  %332 = vmatmul.mubr.bf16.gmra.mrb[0].mxu0 %v294
  %v333 = vpop.f32.mrb[0].mxu0
  %v334 = vadd.f32 0.0, %v333
  %v335 = vpop.f32.mrb[0].mxu0
  %v336 = vpop.f32.mrb[0].mxu0
  %v337 = vadd.f32 0.0, %v336
  %v338 = vpop.f32.mrb[0].mxu0
  %339 = vmatprep.mubr.bf16.mxu0 0
  %340 = vmatmul.mubr.bf16.gmra.mrb[0].mxu0 %v297
  %v341 = vpop.f32.mrb[0].mxu0
  %v342 = vadd.f32 0.0, %v341
  %v343 = vpop.f32.mrb[0].mxu0
  %v344 = vpop.f32.mrb[0].mxu0
  %v345 = vadd.f32 0.0, %v344
  %v346 = vpop.f32.mrb[0].mxu0
  %347 = vdwg.mxu0
  %352 = vrot.lane.b32.xlu0 %v239, 9
  %v353 = vpop.permute.xlu0 %352
  %354 = vrot.lane.b32.xlu0 %v240, 9
  %v355 = vpop.permute.xlu0 %354
  %356 = vrot.lane.b32.xlu0 %v241, 9
  %v357 = vpop.permute.xlu0 %356
  %358 = vrot.lane.b32.xlu0 %v242, 9
  %v359 = vpop.permute.xlu0 %358
  %v365 = vsel %vm292, %v270, 0
  %v368 = vsel %vm292, %v271, 0
  %370 = vmatprep.subr.bf16.mxu0 0
  %371 = vmatpush1.bf16.msra.mxu0 %v353
  %372 = vmatprep.subr.bf16.mxu0 0
  %373 = vmatpush1.bf16.msra.mxu0 %v355
  %374 = vmatprep.subr.bf16.mxu0 0
  %375 = vmatpush1.bf16.msra.mxu0 %v357
  %376 = vmatprep.subr.bf16.mxu0 0
  %377 = vmatpush1.bf16.msra.mxu0 %v359
  %378 = vmatprep.subr.bf16.mxu0 0
  %379 = vmatpush1.bf16.msra.mxu0 0
  %380 = vmatprep.subr.bf16.mxu0 0
  %381 = vmatpush1.bf16.msra.mxu0 0
  %382 = vmatprep.subr.bf16.mxu0 0
  %383 = vmatpush1.bf16.msra.mxu0 0
  %384 = vmatprep.subr.bf16.mxu0 0
  %385 = vmatpush1.bf16.msra.mxu0 0
  %386 = vmatprep.subr.bf16.mxu0 0
  %387 = vmatpush1.bf16.msra.mxu0 0
  %388 = vmatprep.subr.bf16.mxu0 0
  %389 = vmatpush1.bf16.msra.mxu0 0
  %390 = vmatprep.subr.bf16.mxu0 0
  %391 = vmatpush1.bf16.msra.mxu0 0
  %392 = vmatprep.subr.bf16.mxu0 0
  %393 = vmatpush1.bf16.msra.mxu0 0
  %394 = vmatprep.subr.bf16.mxu0 0
  %395 = vmatpush1.bf16.msra.mxu0 0
  %396 = vmatprep.subr.bf16.mxu0 0
  %397 = vmatpush1.bf16.msra.mxu0 0
  %398 = vmatprep.subr.bf16.mxu0 0
  %399 = vmatpush1.bf16.msra.mxu0 0
  %400 = vmatprep.subr.bf16.mxu0 0
  %401 = vmatpush1.bf16.msra.mxu0 0
  %402 = vmatprep.mubr.bf16.mxu0 0
  %403 = vmatmul.mubr.bf16.gmra.mrb[0].mxu0 %v365
  %v404 = vpop.f32.mrb[0].mxu0
  %v405 = vadd.f32 %v334, %v404
  %v406 = vpop.f32.mrb[0].mxu0
  %v407 = vpop.f32.mrb[0].mxu0
  %v408 = vadd.f32 %v337, %v407
  %v409 = vpop.f32.mrb[0].mxu0
  %410 = vmatprep.mubr.bf16.mxu0 0
  %411 = vmatmul.mubr.bf16.gmra.mrb[0].mxu0 %v368
  %v412 = vpop.f32.mrb[0].mxu0
  %v413 = vadd.f32 %v342, %v412
  %v414 = vpop.f32.mrb[0].mxu0
  %v415 = vpop.f32.mrb[0].mxu0
  %v416 = vadd.f32 %v345, %v415
  %v417 = vpop.f32.mrb[0].mxu0
  %418 = vdwg.mxu0
  %v420 = vpack.i.b16 %v215, %v215
  %v422 = vlaneseq
  %v423 = vshrl.u32 %v422, 7
  %v424 = vsub.s32 0, %v423
  %v425 = vrot.slane %v420, %v424
  %427 = vrot.lane.b32.xlu0 %v425, 121
  %v428 = vpop.permute.xlu0 %427
  %v430 = vmul.bf16 %v211, %v428
  %v431 = vmul.bf16 %v212, %v428
  %v432 = vmul.bf16 %v226, %v428
  %v433 = vmul.bf16 %v227, %v428
  %v434 = vld [vmem:[%s7 + $0x4] sm:$0xf]
  %v435 = vld [vmem:[%s7 + $0x18] sm:$0xf]
  %v436 = vld [vmem:[%s7 + $0x2c] sm:$0xf]
  %v437 = vld [vmem:[%s7 + $0x40] sm:$0xf]
  %v442 = vunpack.c.l.b16 %v434
  %v443 = vunpack.c.l.b16 %v435
  %v444 = vunpack.c.l.b16 %v436
  %v445 = vunpack.c.l.b16 %v437
  %v446 = vpack.c.b16 %v443, %v442
  %v447 = vpack.c.b16 %v445, %v444
  %452 = vrot.lane.b32.xlu0 %v430, 7
  %v453 = vpop.permute.xlu0 %452
  %454 = vrot.lane.b32.xlu0 %v431, 7
  %v455 = vpop.permute.xlu0 %454
  %456 = vrot.lane.b32.xlu0 %v432, 7
  %v457 = vpop.permute.xlu0 %456
  %458 = vrot.lane.b32.xlu0 %v433, 7
  %v459 = vpop.permute.xlu0 %458
  %v465 = vsel %vm292, %v446, 0
  %v468 = vsel %vm292, %v447, 0
  %470 = vmatprep.subr.bf16.mxu0 0
  %471 = vmatpush1.bf16.msra.mxu0 %v453
  %472 = vmatprep.subr.bf16.mxu0 0
  %473 = vmatpush1.bf16.msra.mxu0 %v455
  %474 = vmatprep.subr.bf16.mxu0 0
  %475 = vmatpush1.bf16.msra.mxu0 %v457
  %476 = vmatprep.subr.bf16.mxu0 0
  %477 = vmatpush1.bf16.msra.mxu0 %v459
  %478 = vmatprep.subr.bf16.mxu0 0
  %479 = vmatpush1.bf16.msra.mxu0 0
  %480 = vmatprep.subr.bf16.mxu0 0
  %481 = vmatpush1.bf16.msra.mxu0 0
  %482 = vmatprep.subr.bf16.mxu0 0
  %483 = vmatpush1.bf16.msra.mxu0 0
  %484 = vmatprep.subr.bf16.mxu0 0
  %485 = vmatpush1.bf16.msra.mxu0 0
  %486 = vmatprep.subr.bf16.mxu0 0
  %487 = vmatpush1.bf16.msra.mxu0 0
  %488 = vmatprep.subr.bf16.mxu0 0
  %489 = vmatpush1.bf16.msra.mxu0 0
  %490 = vmatprep.subr.bf16.mxu0 0
  %491 = vmatpush1.bf16.msra.mxu0 0
  %492 = vmatprep.subr.bf16.mxu0 0
  %493 = vmatpush1.bf16.msra.mxu0 0
  %494 = vmatprep.subr.bf16.mxu0 0
  %495 = vmatpush1.bf16.msra.mxu0 0
  %496 = vmatprep.subr.bf16.mxu0 0
  %497 = vmatpush1.bf16.msra.mxu0 0
  %498 = vmatprep.subr.bf16.mxu0 0
  %499 = vmatpush1.bf16.msra.mxu0 0
  %500 = vmatprep.subr.bf16.mxu0 0
  %501 = vmatpush1.bf16.msra.mxu0 0
  %502 = vmatprep.mubr.bf16.mxu0 0
  %503 = vmatmul.mubr.bf16.gmra.mrb[0].mxu0 %v465
  %v504 = vpop.f32.mrb[0].mxu0
  %v505 = vadd.f32 0.0, %v504
  %v506 = vpop.f32.mrb[0].mxu0
  %v507 = vpop.f32.mrb[0].mxu0
  %v508 = vadd.f32 0.0, %v507
  %v509 = vpop.f32.mrb[0].mxu0
  %510 = vmatprep.mubr.bf16.mxu0 0
  %511 = vmatmul.mubr.bf16.gmra.mrb[0].mxu0 %v468
  %v512 = vpop.f32.mrb[0].mxu0
  %v513 = vadd.f32 0.0, %v512
  %v514 = vpop.f32.mrb[0].mxu0
  %v515 = vpop.f32.mrb[0].mxu0
  %v516 = vadd.f32 0.0, %v515
  %v517 = vpop.f32.mrb[0].mxu0
  %518 = vdwg.mxu0
  %v519 = vadd.f32 %v405, %v505
  %v520 = vadd.f32 %v408, %v508
  %v521 = vadd.f32 %v413, %v513
  %v522 = vadd.f32 %v416, %v516
  %v524 = vpack.i.b16 %v216, %v216
  %v526 = vlaneseq
  %v527 = vshrl.u32 %v526, 7
  %v528 = vsub.s32 0, %v527
  %v529 = vrot.slane %v524, %v528
  %531 = vrot.lane.b32.xlu0 %v529, 127
  %v532 = vpop.permute.xlu0 %531
  %v534 = vmul.bf16 %v211, %v532
  %v535 = vmul.bf16 %v212, %v532
  %v536 = vmul.bf16 %v226, %v532
  %v537 = vmul.bf16 %v227, %v532
  %538 = vrot.lane.b32.xlu0 %v446, 64
  %v539 = vpop.permute.xlu0 %538
  %540 = vrot.lane.b32.xlu0 %v447, 64
  %v541 = vpop.permute.xlu0 %540
  %546 = vrot.lane.b32.xlu0 %v534, 1
  %v547 = vpop.permute.xlu0 %546
  %548 = vrot.lane.b32.xlu0 %v535, 1
  %v549 = vpop.permute.xlu0 %548
  %550 = vrot.lane.b32.xlu0 %v536, 1
  %v551 = vpop.permute.xlu0 %550
  %552 = vrot.lane.b32.xlu0 %v537, 1
  %v553 = vpop.permute.xlu0 %552
  %v559 = vsel %vm292, %v539, 0
  %v562 = vsel %vm292, %v541, 0
  %564 = vmatprep.subr.bf16.mxu0 0
  %565 = vmatpush1.bf16.msra.mxu0 %v547
  %566 = vmatprep.subr.bf16.mxu0 0
  %567 = vmatpush1.bf16.msra.mxu0 %v549
  %568 = vmatprep.subr.bf16.mxu0 0
  %569 = vmatpush1.bf16.msra.mxu0 %v551
  %570 = vmatprep.subr.bf16.mxu0 0
  %571 = vmatpush1.bf16.msra.mxu0 %v553
  %572 = vmatprep.subr.bf16.mxu0 0
  %573 = vmatpush1.bf16.msra.mxu0 0
  %574 = vmatprep.subr.bf16.mxu0 0
  %575 = vmatpush1.bf16.msra.mxu0 0
  %576 = vmatprep.subr.bf16.mxu0 0
  %577 = vmatpush1.bf16.msra.mxu0 0
  %578 = vmatprep.subr.bf16.mxu0 0
  %579 = vmatpush1.bf16.msra.mxu0 0
  %580 = vmatprep.subr.bf16.mxu0 0
  %581 = vmatpush1.bf16.msra.mxu0 0
  %582 = vmatprep.subr.bf16.mxu0 0
  %583 = vmatpush1.bf16.msra.mxu0 0
  %584 = vmatprep.subr.bf16.mxu0 0
  %585 = vmatpush1.bf16.msra.mxu0 0
  %586 = vmatprep.subr.bf16.mxu0 0
  %587 = vmatpush1.bf16.msra.mxu0 0
  %588 = vmatprep.subr.bf16.mxu0 0
  %589 = vmatpush1.bf16.msra.mxu0 0
  %590 = vmatprep.subr.bf16.mxu0 0
  %591 = vmatpush1.bf16.msra.mxu0 0
  %592 = vmatprep.subr.bf16.mxu0 0
  %593 = vmatpush1.bf16.msra.mxu0 0
  %594 = vmatprep.subr.bf16.mxu0 0
  %595 = vmatpush1.bf16.msra.mxu0 0
  %596 = vmatprep.mubr.bf16.mxu0 0
  %597 = vmatmul.mubr.bf16.gmra.mrb[0].mxu0 %v559
  %v598 = vpop.f32.mrb[0].mxu0
  %v599 = vadd.f32 0.0, %v598
  %v600 = vpop.f32.mrb[0].mxu0
  %v601 = vpop.f32.mrb[0].mxu0
  %v602 = vadd.f32 0.0, %v601
  %v603 = vpop.f32.mrb[0].mxu0
  %604 = vmatprep.mubr.bf16.mxu0 0
  %605 = vmatmul.mubr.bf16.gmra.mrb[0].mxu0 %v562
  %v606 = vpop.f32.mrb[0].mxu0
  %v607 = vadd.f32 0.0, %v606
  %v608 = vpop.f32.mrb[0].mxu0
  %v609 = vpop.f32.mrb[0].mxu0
  %v610 = vadd.f32 0.0, %v609
  %v611 = vpop.f32.mrb[0].mxu0
  %612 = vdwg.mxu0
  %v613 = vadd.f32 %v519, %v599
  %v614 = vadd.f32 %v520, %v602
  %v615 = vadd.f32 %v521, %v607
  %v616 = vadd.f32 %v522, %v610
  %v618 = vpack.i.b16 %v217, %v217
  %v620 = vlaneseq
  %v621 = vshrl.u32 %v620, 7
  %v622 = vsub.s32 0, %v621
  %v623 = vrot.slane %v618, %v622
  %v624 = vmul.bf16 %v211, %v623
  %v625 = vmul.bf16 %v212, %v623
  %v626 = vmul.bf16 %v226, %v623
  %v627 = vmul.bf16 %v227, %v623
  %v628 = vld [vmem:[%s7 + $0x8] sm:$0xf]
  %v629 = vld [vmem:[%s7 + $0x1c] sm:$0xf]
  %v630 = vld [vmem:[%s7 + $0x30] sm:$0xf]
  %v631 = vld [vmem:[%s7 + $0x44] sm:$0xf]
  %v636 = vunpack.c.l.b16 %v628
  %v637 = vunpack.c.l.b16 %v629
  %v638 = vunpack.c.l.b16 %v630
  %v639 = vunpack.c.l.b16 %v631
  %v640 = vpack.c.b16 %v637, %v636
  %v641 = vpack.c.b16 %v639, %v638
  %v643 = vsel %vm292, %v640, 0
  %v646 = vsel %vm292, %v641, 0
  %648 = vmatprep.subr.bf16.mxu0 0
  %649 = vmatpush1.bf16.msra.mxu0 %v624
  %650 = vmatprep.subr.bf16.mxu0 0
  %651 = vmatpush1.bf16.msra.mxu0 %v625
  %652 = vmatprep.subr.bf16.mxu0 0
  %653 = vmatpush1.bf16.msra.mxu0 %v626
  %654 = vmatprep.subr.bf16.mxu0 0
  %655 = vmatpush1.bf16.msra.mxu0 %v627
  %656 = vmatprep.subr.bf16.mxu0 0
  %657 = vmatpush1.bf16.msra.mxu0 0
  %658 = vmatprep.subr.bf16.mxu0 0
  %659 = vmatpush1.bf16.msra.mxu0 0
  %660 = vmatprep.subr.bf16.mxu0 0
  %661 = vmatpush1.bf16.msra.mxu0 0
  %662 = vmatprep.subr.bf16.mxu0 0
  %663 = vmatpush1.bf16.msra.mxu0 0
  %664 = vmatprep.subr.bf16.mxu0 0
  %665 = vmatpush1.bf16.msra.mxu0 0
  %666 = vmatprep.subr.bf16.mxu0 0
  %667 = vmatpush1.bf16.msra.mxu0 0
  %668 = vmatprep.subr.bf16.mxu0 0
  %669 = vmatpush1.bf16.msra.mxu0 0
  %670 = vmatprep.subr.bf16.mxu0 0
  %671 = vmatpush1.bf16.msra.mxu0 0
  %672 = vmatprep.subr.bf16.mxu0 0
  %673 = vmatpush1.bf16.msra.mxu0 0
  %674 = vmatprep.subr.bf16.mxu0 0
  %675 = vmatpush1.bf16.msra.mxu0 0
  %676 = vmatprep.subr.bf16.mxu0 0
  %677 = vmatpush1.bf16.msra.mxu0 0
  %678 = vmatprep.subr.bf16.mxu0 0
  %679 = vmatpush1.bf16.msra.mxu0 0
  %680 = vmatprep.mubr.bf16.mxu0 0
  %681 = vmatmul.mubr.bf16.gmra.mrb[0].mxu0 %v643
  %v682 = vpop.f32.mrb[0].mxu0
  %v683 = vadd.f32 0.0, %v682
  %v684 = vpop.f32.mrb[0].mxu0
  %v685 = vpop.f32.mrb[0].mxu0
  %v686 = vadd.f32 0.0, %v685
  %v687 = vpop.f32.mrb[0].mxu0
  %688 = vmatprep.mubr.bf16.mxu0 0
  %689 = vmatmul.mubr.bf16.gmra.mrb[0].mxu0 %v646
  %v690 = vpop.f32.mrb[0].mxu0
  %v691 = vadd.f32 0.0, %v690
  %v692 = vpop.f32.mrb[0].mxu0
  %v693 = vpop.f32.mrb[0].mxu0
  %v694 = vadd.f32 0.0, %v693
  %v695 = vpop.f32.mrb[0].mxu0
  %696 = vdwg.mxu0
  %v697 = vadd.f32 %v613, %v683
  %v698 = vadd.f32 %v614, %v686
  %v699 = vadd.f32 %v615, %v691
  %v700 = vadd.f32 %v616, %v694
  %v702 = vpack.i.b16 %v218, %v218
  %v704 = vlaneseq
  %v705 = vshrl.u32 %v704, 7
  %v706 = vsub.s32 0, %v705
  %v707 = vrot.slane %v702, %v706
  %709 = vrot.lane.b32.xlu0 %v707, 1
  %v710 = vpop.permute.xlu0 %709
  %v712 = vmul.bf16 %v211, %v710
  %v713 = vmul.bf16 %v212, %v710
  %v714 = vmul.bf16 %v226, %v710
  %v715 = vmul.bf16 %v227, %v710
  %716 = vrot.lane.b32.xlu0 %v640, 64
  %v717 = vpop.permute.xlu0 %716
  %718 = vrot.lane.b32.xlu0 %v641, 64
  %v719 = vpop.permute.xlu0 %718
  %724 = vrot.lane.b32.xlu0 %v712, 127
  %v725 = vpop.permute.xlu0 %724
  %726 = vrot.lane.b32.xlu0 %v713, 127
  %v727 = vpop.permute.xlu0 %726
  %728 = vrot.lane.b32.xlu0 %v714, 127
  %v729 = vpop.permute.xlu0 %728
  %730 = vrot.lane.b32.xlu0 %v715, 127
  %v731 = vpop.permute.xlu0 %730
  %v737 = vsel %vm292, %v717, 0
  %v740 = vsel %vm292, %v719, 0
  %742 = vmatprep.subr.bf16.mxu0 0
  %743 = vmatpush1.bf16.msra.mxu0 %v725
  %744 = vmatprep.subr.bf16.mxu0 0
  %745 = vmatpush1.bf16.msra.mxu0 %v727
  %746 = vmatprep.subr.bf16.mxu0 0
  %747 = vmatpush1.bf16.msra.mxu0 %v729
  %748 = vmatprep.subr.bf16.mxu0 0
  %749 = vmatpush1.bf16.msra.mxu0 %v731
  %750 = vmatprep.subr.bf16.mxu0 0
  %751 = vmatpush1.bf16.msra.mxu0 0
  %752 = vmatprep.subr.bf16.mxu0 0
  %753 = vmatpush1.bf16.msra.mxu0 0
  %754 = vmatprep.subr.bf16.mxu0 0
  %755 = vmatpush1.bf16.msra.mxu0 0
  %756 = vmatprep.subr.bf16.mxu0 0
  %757 = vmatpush1.bf16.msra.mxu0 0
  %758 = vmatprep.subr.bf16.mxu0 0
  %759 = vmatpush1.bf16.msra.mxu0 0
  %760 = vmatprep.subr.bf16.mxu0 0
  %761 = vmatpush1.bf16.msra.mxu0 0
  %762 = vmatprep.subr.bf16.mxu0 0
  %763 = vmatpush1.bf16.msra.mxu0 0
  %764 = vmatprep.subr.bf16.mxu0 0
  %765 = vmatpush1.bf16.msra.mxu0 0
  %766 = vmatprep.subr.bf16.mxu0 0
  %767 = vmatpush1.bf16.msra.mxu0 0
  %768 = vmatprep.subr.bf16.mxu0 0
  %769 = vmatpush1.bf16.msra.mxu0 0
  %770 = vmatprep.subr.bf16.mxu0 0
  %771 = vmatpush1.bf16.msra.mxu0 0
  %772 = vmatprep.subr.bf16.mxu0 0
  %773 = vmatpush1.bf16.msra.mxu0 0
  %774 = vmatprep.mubr.bf16.mxu0 0
  %775 = vmatmul.mubr.bf16.gmra.mrb[0].mxu0 %v737
  %v776 = vpop.f32.mrb[0].mxu0
  %v777 = vadd.f32 0.0, %v776
  %v778 = vpop.f32.mrb[0].mxu0
  %v779 = vpop.f32.mrb[0].mxu0
  %v780 = vadd.f32 0.0, %v779
  %v781 = vpop.f32.mrb[0].mxu0
  %782 = vmatprep.mubr.bf16.mxu0 0
  %783 = vmatmul.mubr.bf16.gmra.mrb[0].mxu0 %v740
  %v784 = vpop.f32.mrb[0].mxu0
  %v785 = vadd.f32 0.0, %v784
  %v786 = vpop.f32.mrb[0].mxu0
  %v787 = vpop.f32.mrb[0].mxu0
  %v788 = vadd.f32 0.0, %v787
  %v789 = vpop.f32.mrb[0].mxu0
  %790 = vdwg.mxu0
  %v791 = vadd.f32 %v697, %v777
  %v792 = vadd.f32 %v698, %v780
  %v793 = vadd.f32 %v699, %v785
  %v794 = vadd.f32 %v700, %v788
  %v796 = vpack.i.b16 %v219, %v219
  %v798 = vlaneseq
  %v799 = vshrl.u32 %v798, 7
  %v800 = vsub.s32 0, %v799
  %v801 = vrot.slane %v796, %v800
  %803 = vrot.lane.b32.xlu0 %v801, 7
  %v804 = vpop.permute.xlu0 %803
  %v806 = vmul.bf16 %v211, %v804
  %v807 = vmul.bf16 %v212, %v804
  %v808 = vmul.bf16 %v226, %v804
  %v809 = vmul.bf16 %v227, %v804
  %v810 = vld [vmem:[%s7 + $0xc] sm:$0xf]
  %v811 = vld [vmem:[%s7 + $0x20] sm:$0xf]
  %v812 = vld [vmem:[%s7 + $0x34] sm:$0xf]
  %v813 = vld [vmem:[%s7 + $0x48] sm:$0xf]
  %v818 = vunpack.c.l.b16 %v810
  %v819 = vunpack.c.l.b16 %v811
  %v820 = vunpack.c.l.b16 %v812
  %v821 = vunpack.c.l.b16 %v813
  %v822 = vpack.c.b16 %v819, %v818
  %v823 = vpack.c.b16 %v821, %v820
  %828 = vrot.lane.b32.xlu0 %v806, 121
  %v829 = vpop.permute.xlu0 %828
  %830 = vrot.lane.b32.xlu0 %v807, 121
  %v831 = vpop.permute.xlu0 %830
  %832 = vrot.lane.b32.xlu0 %v808, 121
  %v833 = vpop.permute.xlu0 %832
  %834 = vrot.lane.b32.xlu0 %v809, 121
  %v835 = vpop.permute.xlu0 %834
  %v841 = vsel %vm292, %v822, 0
  %v844 = vsel %vm292, %v823, 0
  %846 = vmatprep.subr.bf16.mxu0 0
  %847 = vmatpush1.bf16.msra.mxu0 %v829
  %848 = vmatprep.subr.bf16.mxu0 0
  %849 = vmatpush1.bf16.msra.mxu0 %v831
  %850 = vmatprep.subr.bf16.mxu0 0
  %851 = vmatpush1.bf16.msra.mxu0 %v833
  %852 = vmatprep.subr.bf16.mxu0 0
  %853 = vmatpush1.bf16.msra.mxu0 %v835
  %854 = vmatprep.subr.bf16.mxu0 0
  %855 = vmatpush1.bf16.msra.mxu0 0
  %856 = vmatprep.subr.bf16.mxu0 0
  %857 = vmatpush1.bf16.msra.mxu0 0
  %858 = vmatprep.subr.bf16.mxu0 0
  %859 = vmatpush1.bf16.msra.mxu0 0
  %860 = vmatprep.subr.bf16.mxu0 0
  %861 = vmatpush1.bf16.msra.mxu0 0
  %862 = vmatprep.subr.bf16.mxu0 0
  %863 = vmatpush1.bf16.msra.mxu0 0
  %864 = vmatprep.subr.bf16.mxu0 0
  %865 = vmatpush1.bf16.msra.mxu0 0
  %866 = vmatprep.subr.bf16.mxu0 0
  %867 = vmatpush1.bf16.msra.mxu0 0
  %868 = vmatprep.subr.bf16.mxu0 0
  %869 = vmatpush1.bf16.msra.mxu0 0
  %870 = vmatprep.subr.bf16.mxu0 0
  %871 = vmatpush1.bf16.msra.mxu0 0
  %872 = vmatprep.subr.bf16.mxu0 0
  %873 = vmatpush1.bf16.msra.mxu0 0
  %874 = vmatprep.subr.bf16.mxu0 0
  %875 = vmatpush1.bf16.msra.mxu0 0
  %876 = vmatprep.subr.bf16.mxu0 0
  %877 = vmatpush1.bf16.msra.mxu0 0
  %878 = vmatprep.mubr.bf16.mxu0 0
  %879 = vmatmul.mubr.bf16.gmra.mrb[0].mxu0 %v841
  %v880 = vpop.f32.mrb[0].mxu0
  %v881 = vadd.f32 0.0, %v880
  %v882 = vpop.f32.mrb[0].mxu0
  %v883 = vpop.f32.mrb[0].mxu0
  %v884 = vadd.f32 0.0, %v883
  %v885 = vpop.f32.mrb[0].mxu0
  %886 = vmatprep.mubr.bf16.mxu0 0
  %887 = vmatmul.mubr.bf16.gmra.mrb[0].mxu0 %v844
  %v888 = vpop.f32.mrb[0].mxu0
  %v889 = vadd.f32 0.0, %v888
  %v890 = vpop.f32.mrb[0].mxu0
  %v891 = vpop.f32.mrb[0].mxu0
  %v892 = vadd.f32 0.0, %v891
  %v893 = vpop.f32.mrb[0].mxu0
  %894 = vdwg.mxu0
  %v895 = vadd.f32 %v791, %v881
  %v896 = vadd.f32 %v792, %v884
  %v897 = vadd.f32 %v793, %v889
  %v898 = vadd.f32 %v794, %v892
  %v900 = vpack.i.b16 %v220, %v220
  %v902 = vlaneseq
  %v903 = vshrl.u32 %v902, 7
  %v904 = vsub.s32 0, %v903
  %v905 = vrot.slane %v900, %v904
  %907 = vrot.lane.b32.xlu0 %v905, 8
  %v908 = vpop.permute.xlu0 %907
  %v910 = vmul.bf16 %v211, %v908
  %v911 = vmul.bf16 %v212, %v908
  %v912 = vmul.bf16 %v226, %v908
  %v913 = vmul.bf16 %v227, %v908
  %914 = vrot.lane.b32.xlu0 %v822, 64
  %v915 = vpop.permute.xlu0 %914
  %916 = vrot.lane.b32.xlu0 %v823, 64
  %v917 = vpop.permute.xlu0 %916
  %922 = vrot.lane.b32.xlu0 %v910, 120
  %v923 = vpop.permute.xlu0 %922
  %924 = vrot.lane.b32.xlu0 %v911, 120
  %v925 = vpop.permute.xlu0 %924
  %926 = vrot.lane.b32.xlu0 %v912, 120
  %v927 = vpop.permute.xlu0 %926
  %928 = vrot.lane.b32.xlu0 %v913, 120
  %v929 = vpop.permute.xlu0 %928
  %v935 = vsel %vm292, %v915, 0
  %v938 = vsel %vm292, %v917, 0
  %940 = vmatprep.subr.bf16.mxu0 0
  %941 = vmatpush1.bf16.msra.mxu0 %v923
  %942 = vmatprep.subr.bf16.mxu0 0
  %943 = vmatpush1.bf16.msra.mxu0 %v925
  %944 = vmatprep.subr.bf16.mxu0 0
  %945 = vmatpush1.bf16.msra.mxu0 %v927
  %946 = vmatprep.subr.bf16.mxu0 0
  %947 = vmatpush1.bf16.msra.mxu0 %v929
  %948 = vmatprep.subr.bf16.mxu0 0
  %949 = vmatpush1.bf16.msra.mxu0 0
  %950 = vmatprep.subr.bf16.mxu0 0
  %951 = vmatpush1.bf16.msra.mxu0 0
  %952 = vmatprep.subr.bf16.mxu0 0
  %953 = vmatpush1.bf16.msra.mxu0 0
  %954 = vmatprep.subr.bf16.mxu0 0
  %955 = vmatpush1.bf16.msra.mxu0 0
  %956 = vmatprep.subr.bf16.mxu0 0
  %957 = vmatpush1.bf16.msra.mxu0 0
  %958 = vmatprep.subr.bf16.mxu0 0
  %959 = vmatpush1.bf16.msra.mxu0 0
  %960 = vmatprep.subr.bf16.mxu0 0
  %961 = vmatpush1.bf16.msra.mxu0 0
  %962 = vmatprep.subr.bf16.mxu0 0
  %963 = vmatpush1.bf16.msra.mxu0 0
  %964 = vmatprep.subr.bf16.mxu0 0
  %965 = vmatpush1.bf16.msra.mxu0 0
  %966 = vmatprep.subr.bf16.mxu0 0
  %967 = vmatpush1.bf16.msra.mxu0 0
  %968 = vmatprep.subr.bf16.mxu0 0
  %969 = vmatpush1.bf16.msra.mxu0 0
  %970 = vmatprep.subr.bf16.mxu0 0
  %971 = vmatpush1.bf16.msra.mxu0 0
  %972 = vmatprep.mubr.bf16.mxu0 0
  %973 = vmatmul.mubr.bf16.gmra.mrb[0].mxu0 %v935
  %v974 = vpop.f32.mrb[0].mxu0
  %v975 = vadd.f32 0.0, %v974
  %v976 = vpop.f32.mrb[0].mxu0
  %v977 = vpop.f32.mrb[0].mxu0
  %v978 = vadd.f32 0.0, %v977
  %v979 = vpop.f32.mrb[0].mxu0
  %980 = vmatprep.mubr.bf16.mxu0 0
  %981 = vmatmul.mubr.bf16.gmra.mrb[0].mxu0 %v938
  %v982 = vpop.f32.mrb[0].mxu0
  %v983 = vadd.f32 0.0, %v982
  %v984 = vpop.f32.mrb[0].mxu0
  %v985 = vpop.f32.mrb[0].mxu0
  %v986 = vadd.f32 0.0, %v985
  %v987 = vpop.f32.mrb[0].mxu0
  %988 = vdwg.mxu0
  %v989 = vadd.f32 %v895, %v975
  %v990 = vadd.f32 %v896, %v978
  %v991 = vadd.f32 %v897, %v983
  %v992 = vadd.f32 %v898, %v986
  %v994 = vpack.i.b16 %v221, %v221
  %v996 = vlaneseq
  %v997 = vshrl.u32 %v996, 7
  %v998 = vsub.s32 0, %v997
  %v999 = vrot.slane %v994, %v998
  %1001 = vrot.lane.b32.xlu0 %v999, 9
  %v1002 = vpop.permute.xlu0 %1001
  %v1004 = vmul.bf16 %v211, %v1002
  %v1005 = vmul.bf16 %v212, %v1002
  %v1006 = vmul.bf16 %v226, %v1002
  %v1007 = vmul.bf16 %v227, %v1002
  %v1008 = vld [vmem:[%s7 + $0x10] sm:$0xf]
  %v1009 = vld [vmem:[%s7 + $0x24] sm:$0xf]
  %v1010 = vld [vmem:[%s7 + $0x38] sm:$0xf]
  %v1011 = vld [vmem:[%s7 + $0x4c] sm:$0xf]
  %v1016 = vunpack.c.l.b16 %v1008
  %v1017 = vunpack.c.l.b16 %v1009
  %v1018 = vunpack.c.l.b16 %v1010
  %v1019 = vunpack.c.l.b16 %v1011
  %v1020 = vpack.c.b16 %v1017, %v1016
  %v1021 = vpack.c.b16 %v1019, %v1018
  %1026 = vrot.lane.b32.xlu0 %v1004, 119
  %v1027 = vpop.permute.xlu0 %1026
  %1028 = vrot.lane.b32.xlu0 %v1005, 119
  %v1029 = vpop.permute.xlu0 %1028
  %1030 = vrot.lane.b32.xlu0 %v1006, 119
  %v1031 = vpop.permute.xlu0 %1030
  %1032 = vrot.lane.b32.xlu0 %v1007, 119
  %v1033 = vpop.permute.xlu0 %1032
  %v1039 = vsel %vm292, %v1020, 0
  %v1042 = vsel %vm292, %v1021, 0
  %1044 = vmatprep.subr.bf16.mxu0 0
  %1045 = vmatpush1.bf16.msra.mxu0 %v1027
  %1046 = vmatprep.subr.bf16.mxu0 0
  %1047 = vmatpush1.bf16.msra.mxu0 %v1029
  %1048 = vmatprep.subr.bf16.mxu0 0
  %1049 = vmatpush1.bf16.msra.mxu0 %v1031
  %1050 = vmatprep.subr.bf16.mxu0 0
  %1051 = vmatpush1.bf16.msra.mxu0 %v1033
  %1052 = vmatprep.subr.bf16.mxu0 0
  %1053 = vmatpush1.bf16.msra.mxu0 0
  %1054 = vmatprep.subr.bf16.mxu0 0
  %1055 = vmatpush1.bf16.msra.mxu0 0
  %1056 = vmatprep.subr.bf16.mxu0 0
  %1057 = vmatpush1.bf16.msra.mxu0 0
  %1058 = vmatprep.subr.bf16.mxu0 0
  %1059 = vmatpush1.bf16.msra.mxu0 0
  %1060 = vmatprep.subr.bf16.mxu0 0
  %1061 = vmatpush1.bf16.msra.mxu0 0
  %1062 = vmatprep.subr.bf16.mxu0 0
  %1063 = vmatpush1.bf16.msra.mxu0 0
  %1064 = vmatprep.subr.bf16.mxu0 0
  %1065 = vmatpush1.bf16.msra.mxu0 0
  %1066 = vmatprep.subr.bf16.mxu0 0
  %1067 = vmatpush1.bf16.msra.mxu0 0
  %1068 = vmatprep.subr.bf16.mxu0 0
  %1069 = vmatpush1.bf16.msra.mxu0 0
  %1070 = vmatprep.subr.bf16.mxu0 0
  %1071 = vmatpush1.bf16.msra.mxu0 0
  %1072 = vmatprep.subr.bf16.mxu0 0
  %1073 = vmatpush1.bf16.msra.mxu0 0
  %1074 = vmatprep.subr.bf16.mxu0 0
  %1075 = vmatpush1.bf16.msra.mxu0 0
  %1076 = vmatprep.mubr.bf16.mxu0 0
  %1077 = vmatmul.mubr.bf16.gmra.mrb[0].mxu0 %v1039
  %v1078 = vpop.f32.mrb[0].mxu0
  %v1079 = vadd.f32 0.0, %v1078
  %v1080 = vpop.f32.mrb[0].mxu0
  %v1081 = vpop.f32.mrb[0].mxu0
  %v1082 = vadd.f32 0.0, %v1081
  %v1083 = vpop.f32.mrb[0].mxu0
  %1084 = vmatprep.mubr.bf16.mxu0 0
  %1085 = vmatmul.mubr.bf16.gmra.mrb[0].mxu0 %v1042
  %v1086 = vpop.f32.mrb[0].mxu0
  %v1087 = vadd.f32 0.0, %v1086
  %v1088 = vpop.f32.mrb[0].mxu0
  %v1089 = vpop.f32.mrb[0].mxu0
  %v1090 = vadd.f32 0.0, %v1089
  %v1091 = vpop.f32.mrb[0].mxu0
  %1092 = vdwg.mxu0
  %v1093 = vadd.f32 %v989, %v1079
  %v1094 = vadd.f32 %v990, %v1082
  %v1095 = vadd.f32 %v991, %v1087
  %v1096 = vadd.f32 %v992, %v1090
  %v1097 = vld [vmem:[%s9] sm:$0xff]
  %v1098 = vld [vmem:[%s9 + $0x8] sm:$0xff]
  %v1099 = vld [vmem:[%s9 + $0x10] sm:$0xff]
  %v1100 = vld [vmem:[%s9 + $0x18] sm:$0xff]
  %1102 = vset.pattern.permute.xlu0 0
  %1103 = vperm.xlu0 %1102, %v1097
  %v1104 = vpop.permute.xlu0 %1103
  %1107 = vset.pattern.permute.xlu0 0
  %1108 = vperm.xlu0 %1107, %v1098
  %v1109 = vpop.permute.xlu0 %1108
  %1112 = vset.pattern.permute.xlu0 0
  %1113 = vperm.xlu0 %1112, %v1099
  %v1114 = vpop.permute.xlu0 %1113
  %1117 = vset.pattern.permute.xlu0 0
  %1118 = vperm.xlu0 %1117, %v1100
  %v1119 = vpop.permute.xlu0 %1118
  %v1121 = vmul.f32 %v222, %v1104
  %v1122 = vmul.f32 %v223, %v1109
  %v1123 = vmul.f32 %v224, %v1114
  %v1124 = vmul.f32 %v225, %v1119
  %v1125 = vadd.f32 %v1121, %v1093
  %v1126 = vadd.f32 %v1122, %v1094
  %v1127 = vadd.f32 %v1123, %v1095
  %v1128 = vadd.f32 %v1124, %v1096
  %v1129 = vld [vmem:[%s8] sm:$0xff]
  %v1130 = vld [vmem:[%s8 + $0x8] sm:$0xff]
  %v1131 = vld [vmem:[%s8 + $0x10] sm:$0xff]
  %v1132 = vld [vmem:[%s8 + $0x18] sm:$0xff]
  %1134 = vset.pattern.permute.xlu0 0
  %1135 = vperm.xlu0 %1134, %v1129
  %v1136 = vpop.permute.xlu0 %1135
  %1139 = vset.pattern.permute.xlu0 0
  %1140 = vperm.xlu0 %1139, %v1130
  %v1141 = vpop.permute.xlu0 %1140
  %1144 = vset.pattern.permute.xlu0 0
  %1145 = vperm.xlu0 %1144, %v1131
  %v1146 = vpop.permute.xlu0 %1145
  %1149 = vset.pattern.permute.xlu0 0
  %1150 = vperm.xlu0 %1149, %v1132
  %v1151 = vpop.permute.xlu0 %1150
  %v1153 = vadd.f32 %v1125, %v1136
  %v1154 = vadd.f32 %v1126, %v1141
  %v1155 = vadd.f32 %v1127, %v1146
  %v1156 = vadd.f32 %v1128, %v1151
  %v1157 = vtanh.pop %v1153
  %v1158 = vtanh.pop %v1154
  %v1159 = vtanh.pop %v1155
  %v1160 = vtanh.pop %v1156
  %1161 = vst [vmem:[%s14] sm:$0xff] %v1157
  %1162 = vst [vmem:[%s14 + $0x8] sm:$0xff] %v1158
  %1163 = vst [vmem:[%s14 + $0x10] sm:$0xff] %v1159
  %1164 = vst [vmem:[%s14 + $0x18] sm:$0xff] %v1160
  %v1165 = vpack.c.bf16 %v1158, %v1157
  %v1166 = vpack.c.bf16 %v1160, %v1159
  %v1167 = vmul.bf16 %v1165, %v237
  %v1168 = vmul.bf16 %v1166, %v237
  %v1169 = vld [vmem:[%s10] sm:$0xf]
  %v1170 = vld [vmem:[%s10 + $0xc] sm:$0xf]
  %v1171 = vld [vmem:[%s10 + $0x18] sm:$0xf]
  %v1172 = vld [vmem:[%s10 + $0x24] sm:$0xf]
  %v1173 = vmul.bf16 %v1165, %v256
  %v1174 = vmul.bf16 %v1166, %v256
  %v1179 = vunpack.c.l.b16 %v1169
  %v1180 = vunpack.c.l.b16 %v1170
  %v1181 = vunpack.c.l.b16 %v1171
  %v1182 = vunpack.c.l.b16 %v1172
  %v1183 = vpack.c.b16 %v1180, %v1179
  %v1184 = vpack.c.b16 %v1182, %v1181
  %1185 = vrot.lane.b32.xlu0 %v1183, 96
  %v1186 = vpop.permute.xlu0 %1185
  %1187 = vrot.lane.b32.xlu0 %v1184, 96
  %v1188 = vpop.permute.xlu0 %1187
  %1191 = vrot.lane.b32.xlu0 %v1173, 8
  %v1192 = vpop.permute.xlu0 %1191
  %1193 = vrot.lane.b32.xlu0 %v1174, 8
  %v1194 = vpop.permute.xlu0 %1193
  %vm1197 = vcmask 261120
  %v1199 = vsel %vm1197, %v1186, 0
  %v1202 = vsel %vm1197, %v1188, 0
  %1204 = vmatprep.subr.bf16.mxu0 0
  %1205 = vmatpush1.bf16.msra.mxu0 %v1192
  %1206 = vmatprep.subr.bf16.mxu0 0
  %1207 = vmatpush1.bf16.msra.mxu0 %v1194
  %1208 = vmatprep.subr.bf16.mxu0 0
  %1209 = vmatpush1.bf16.msra.mxu0 0
  %1210 = vmatprep.subr.bf16.mxu0 0
  %1211 = vmatpush1.bf16.msra.mxu0 0
  %1212 = vmatprep.subr.bf16.mxu0 0
  %1213 = vmatpush1.bf16.msra.mxu0 0
  %1214 = vmatprep.subr.bf16.mxu0 0
  %1215 = vmatpush1.bf16.msra.mxu0 0
  %1216 = vmatprep.subr.bf16.mxu0 0
  %1217 = vmatpush1.bf16.msra.mxu0 0
  %1218 = vmatprep.subr.bf16.mxu0 0
  %1219 = vmatpush1.bf16.msra.mxu0 0
  %1220 = vmatprep.subr.bf16.mxu0 0
  %1221 = vmatpush1.bf16.msra.mxu0 0
  %1222 = vmatprep.subr.bf16.mxu0 0
  %1223 = vmatpush1.bf16.msra.mxu0 0
  %1224 = vmatprep.subr.bf16.mxu0 0
  %1225 = vmatpush1.bf16.msra.mxu0 0
  %1226 = vmatprep.subr.bf16.mxu0 0
  %1227 = vmatpush1.bf16.msra.mxu0 0
  %1228 = vmatprep.subr.bf16.mxu0 0
  %1229 = vmatpush1.bf16.msra.mxu0 0
  %1230 = vmatprep.subr.bf16.mxu0 0
  %1231 = vmatpush1.bf16.msra.mxu0 0
  %1232 = vmatprep.subr.bf16.mxu0 0
  %1233 = vmatpush1.bf16.msra.mxu0 0
  %1234 = vmatprep.subr.bf16.mxu0 0
  %1235 = vmatpush1.bf16.msra.mxu0 0
  %1236 = vmatprep.mubr.bf16.mxu0 0
  %1237 = vmatmul.mubr.bf16.gmra.mrb[0].mxu0 %v1199
  %v1238 = vpop.f32.mrb[0].mxu0
  %v1239 = vadd.f32 0.0, %v1238
  %v1240 = vpop.f32.mrb[0].mxu0
  %v1241 = vpop.f32.mrb[0].mxu0
  %v1242 = vadd.f32 0.0, %v1241
  %v1243 = vpop.f32.mrb[0].mxu0
  %1244 = vmatprep.mubr.bf16.mxu0 0
  %1245 = vmatmul.mubr.bf16.gmra.mrb[0].mxu0 %v1202
  %v1246 = vpop.f32.mrb[0].mxu0
  %v1247 = vadd.f32 0.0, %v1246
  %v1248 = vpop.f32.mrb[0].mxu0
  %v1249 = vpop.f32.mrb[0].mxu0
  %v1250 = vadd.f32 0.0, %v1249
  %v1251 = vpop.f32.mrb[0].mxu0
  %1252 = vdwg.mxu0
  %1255 = vrot.lane.b32.xlu0 %v1167, 9
  %v1256 = vpop.permute.xlu0 %1255
  %1257 = vrot.lane.b32.xlu0 %v1168, 9
  %v1258 = vpop.permute.xlu0 %1257
  %v1262 = vsel %vm1197, %v1183, 0
  %v1265 = vsel %vm1197, %v1184, 0
  %1267 = vmatprep.subr.bf16.mxu0 0
  %1268 = vmatpush1.bf16.msra.mxu0 %v1256
  %1269 = vmatprep.subr.bf16.mxu0 0
  %1270 = vmatpush1.bf16.msra.mxu0 %v1258
  %1271 = vmatprep.subr.bf16.mxu0 0
  %1272 = vmatpush1.bf16.msra.mxu0 0
  %1273 = vmatprep.subr.bf16.mxu0 0
  %1274 = vmatpush1.bf16.msra.mxu0 0
  %1275 = vmatprep.subr.bf16.mxu0 0
  %1276 = vmatpush1.bf16.msra.mxu0 0
  %1277 = vmatprep.subr.bf16.mxu0 0
  %1278 = vmatpush1.bf16.msra.mxu0 0
  %1279 = vmatprep.subr.bf16.mxu0 0
  %1280 = vmatpush1.bf16.msra.mxu0 0
  %1281 = vmatprep.subr.bf16.mxu0 0
  %1282 = vmatpush1.bf16.msra.mxu0 0
  %1283 = vmatprep.subr.bf16.mxu0 0
  %1284 = vmatpush1.bf16.msra.mxu0 0
  %1285 = vmatprep.subr.bf16.mxu0 0
  %1286 = vmatpush1.bf16.msra.mxu0 0
  %1287 = vmatprep.subr.bf16.mxu0 0
  %1288 = vmatpush1.bf16.msra.mxu0 0
  %1289 = vmatprep.subr.bf16.mxu0 0
  %1290 = vmatpush1.bf16.msra.mxu0 0
  %1291 = vmatprep.subr.bf16.mxu0 0
  %1292 = vmatpush1.bf16.msra.mxu0 0
  %1293 = vmatprep.subr.bf16.mxu0 0
  %1294 = vmatpush1.bf16.msra.mxu0 0
  %1295 = vmatprep.subr.bf16.mxu0 0
  %1296 = vmatpush1.bf16.msra.mxu0 0
  %1297 = vmatprep.subr.bf16.mxu0 0
  %1298 = vmatpush1.bf16.msra.mxu0 0
  %1299 = vmatprep.mubr.bf16.mxu0 0
  %1300 = vmatmul.mubr.bf16.gmra.mrb[0].mxu0 %v1262
  %v1301 = vpop.f32.mrb[0].mxu0
  %v1302 = vadd.f32 %v1239, %v1301
  %v1303 = vpop.f32.mrb[0].mxu0
  %v1304 = vpop.f32.mrb[0].mxu0
  %v1305 = vadd.f32 %v1242, %v1304
  %v1306 = vpop.f32.mrb[0].mxu0
  %1307 = vmatprep.mubr.bf16.mxu0 0
  %1308 = vmatmul.mubr.bf16.gmra.mrb[0].mxu0 %v1265
  %v1309 = vpop.f32.mrb[0].mxu0
  %v1310 = vadd.f32 %v1247, %v1309
  %v1311 = vpop.f32.mrb[0].mxu0
  %v1312 = vpop.f32.mrb[0].mxu0
  %v1313 = vadd.f32 %v1250, %v1312
  %v1314 = vpop.f32.mrb[0].mxu0
  %1315 = vdwg.mxu0
  %v1316 = vmul.bf16 %v1165, %v428
  %v1317 = vmul.bf16 %v1166, %v428
  %1318 = vrot.lane.b32.xlu0 %v1183, 64
  %v1319 = vpop.permute.xlu0 %1318
  %1320 = vrot.lane.b32.xlu0 %v1184, 64
  %v1321 = vpop.permute.xlu0 %1320
  %1324 = vrot.lane.b32.xlu0 %v1316, 7
  %v1325 = vpop.permute.xlu0 %1324
  %1326 = vrot.lane.b32.xlu0 %v1317, 7
  %v1327 = vpop.permute.xlu0 %1326
  %v1331 = vsel %vm1197, %v1319, 0
  %v1334 = vsel %vm1197, %v1321, 0
  %1336 = vmatprep.subr.bf16.mxu0 0
  %1337 = vmatpush1.bf16.msra.mxu0 %v1325
  %1338 = vmatprep.subr.bf16.mxu0 0
  %1339 = vmatpush1.bf16.msra.mxu0 %v1327
  %1340 = vmatprep.subr.bf16.mxu0 0
  %1341 = vmatpush1.bf16.msra.mxu0 0
  %1342 = vmatprep.subr.bf16.mxu0 0
  %1343 = vmatpush1.bf16.msra.mxu0 0
  %1344 = vmatprep.subr.bf16.mxu0 0
  %1345 = vmatpush1.bf16.msra.mxu0 0
  %1346 = vmatprep.subr.bf16.mxu0 0
  %1347 = vmatpush1.bf16.msra.mxu0 0
  %1348 = vmatprep.subr.bf16.mxu0 0
  %1349 = vmatpush1.bf16.msra.mxu0 0
  %1350 = vmatprep.subr.bf16.mxu0 0
  %1351 = vmatpush1.bf16.msra.mxu0 0
  %1352 = vmatprep.subr.bf16.mxu0 0
  %1353 = vmatpush1.bf16.msra.mxu0 0
  %1354 = vmatprep.subr.bf16.mxu0 0
  %1355 = vmatpush1.bf16.msra.mxu0 0
  %1356 = vmatprep.subr.bf16.mxu0 0
  %1357 = vmatpush1.bf16.msra.mxu0 0
  %1358 = vmatprep.subr.bf16.mxu0 0
  %1359 = vmatpush1.bf16.msra.mxu0 0
  %1360 = vmatprep.subr.bf16.mxu0 0
  %1361 = vmatpush1.bf16.msra.mxu0 0
  %1362 = vmatprep.subr.bf16.mxu0 0
  %1363 = vmatpush1.bf16.msra.mxu0 0
  %1364 = vmatprep.subr.bf16.mxu0 0
  %1365 = vmatpush1.bf16.msra.mxu0 0
  %1366 = vmatprep.subr.bf16.mxu0 0
  %1367 = vmatpush1.bf16.msra.mxu0 0
  %1368 = vmatprep.mubr.bf16.mxu0 0
  %1369 = vmatmul.mubr.bf16.gmra.mrb[0].mxu0 %v1331
  %v1370 = vpop.f32.mrb[0].mxu0
  %v1371 = vadd.f32 0.0, %v1370
  %v1372 = vpop.f32.mrb[0].mxu0
  %v1373 = vpop.f32.mrb[0].mxu0
  %v1374 = vadd.f32 0.0, %v1373
  %v1375 = vpop.f32.mrb[0].mxu0
  %1376 = vmatprep.mubr.bf16.mxu0 0
  %1377 = vmatmul.mubr.bf16.gmra.mrb[0].mxu0 %v1334
  %v1378 = vpop.f32.mrb[0].mxu0
  %v1379 = vadd.f32 0.0, %v1378
  %v1380 = vpop.f32.mrb[0].mxu0
  %v1381 = vpop.f32.mrb[0].mxu0
  %v1382 = vadd.f32 0.0, %v1381
  %v1383 = vpop.f32.mrb[0].mxu0
  %1384 = vdwg.mxu0
  %v1385 = vadd.f32 %v1302, %v1371
  %v1386 = vadd.f32 %v1305, %v1374
  %v1387 = vadd.f32 %v1310, %v1379
  %v1388 = vadd.f32 %v1313, %v1382
  %v1389 = vmul.bf16 %v1165, %v532
  %v1390 = vmul.bf16 %v1166, %v532
  %1391 = vrot.lane.b32.xlu0 %v1183, 32
  %v1392 = vpop.permute.xlu0 %1391
  %1393 = vrot.lane.b32.xlu0 %v1184, 32
  %v1394 = vpop.permute.xlu0 %1393
  %1397 = vrot.lane.b32.xlu0 %v1389, 1
  %v1398 = vpop.permute.xlu0 %1397
  %1399 = vrot.lane.b32.xlu0 %v1390, 1
  %v1400 = vpop.permute.xlu0 %1399
  %v1404 = vsel %vm1197, %v1392, 0
  %v1407 = vsel %vm1197, %v1394, 0
  %1409 = vmatprep.subr.bf16.mxu0 0
  %1410 = vmatpush1.bf16.msra.mxu0 %v1398
  %1411 = vmatprep.subr.bf16.mxu0 0
  %1412 = vmatpush1.bf16.msra.mxu0 %v1400
  %1413 = vmatprep.subr.bf16.mxu0 0
  %1414 = vmatpush1.bf16.msra.mxu0 0
  %1415 = vmatprep.subr.bf16.mxu0 0
  %1416 = vmatpush1.bf16.msra.mxu0 0
  %1417 = vmatprep.subr.bf16.mxu0 0
  %1418 = vmatpush1.bf16.msra.mxu0 0
  %1419 = vmatprep.subr.bf16.mxu0 0
  %1420 = vmatpush1.bf16.msra.mxu0 0
  %1421 = vmatprep.subr.bf16.mxu0 0
  %1422 = vmatpush1.bf16.msra.mxu0 0
  %1423 = vmatprep.subr.bf16.mxu0 0
  %1424 = vmatpush1.bf16.msra.mxu0 0
  %1425 = vmatprep.subr.bf16.mxu0 0
  %1426 = vmatpush1.bf16.msra.mxu0 0
  %1427 = vmatprep.subr.bf16.mxu0 0
  %1428 = vmatpush1.bf16.msra.mxu0 0
  %1429 = vmatprep.subr.bf16.mxu0 0
  %1430 = vmatpush1.bf16.msra.mxu0 0
  %1431 = vmatprep.subr.bf16.mxu0 0
  %1432 = vmatpush1.bf16.msra.mxu0 0
  %1433 = vmatprep.subr.bf16.mxu0 0
  %1434 = vmatpush1.bf16.msra.mxu0 0
  %1435 = vmatprep.subr.bf16.mxu0 0
  %1436 = vmatpush1.bf16.msra.mxu0 0
  %1437 = vmatprep.subr.bf16.mxu0 0
  %1438 = vmatpush1.bf16.msra.mxu0 0
  %1439 = vmatprep.subr.bf16.mxu0 0
  %1440 = vmatpush1.bf16.msra.mxu0 0
  %1441 = vmatprep.mubr.bf16.mxu0 0
  %1442 = vmatmul.mubr.bf16.gmra.mrb[0].mxu0 %v1404
  %v1443 = vpop.f32.mrb[0].mxu0
  %v1444 = vadd.f32 0.0, %v1443
  %v1445 = vpop.f32.mrb[0].mxu0
  %v1446 = vpop.f32.mrb[0].mxu0
  %v1447 = vadd.f32 0.0, %v1446
  %v1448 = vpop.f32.mrb[0].mxu0
  %1449 = vmatprep.mubr.bf16.mxu0 0
  %1450 = vmatmul.mubr.bf16.gmra.mrb[0].mxu0 %v1407
  %v1451 = vpop.f32.mrb[0].mxu0
  %v1452 = vadd.f32 0.0, %v1451
  %v1453 = vpop.f32.mrb[0].mxu0
  %v1454 = vpop.f32.mrb[0].mxu0
  %v1455 = vadd.f32 0.0, %v1454
  %v1456 = vpop.f32.mrb[0].mxu0
  %1457 = vdwg.mxu0
  %v1458 = vadd.f32 %v1385, %v1444
  %v1459 = vadd.f32 %v1386, %v1447
  %v1460 = vadd.f32 %v1387, %v1452
  %v1461 = vadd.f32 %v1388, %v1455
  %v1462 = vmul.bf16 %v1165, %v623
  %v1463 = vmul.bf16 %v1166, %v623
  %v1464 = vld [vmem:[%s10 + $0x4] sm:$0xf]
  %v1465 = vld [vmem:[%s10 + $0x10] sm:$0xf]
  %v1466 = vld [vmem:[%s10 + $0x1c] sm:$0xf]
  %v1467 = vld [vmem:[%s10 + $0x28] sm:$0xf]
  %v1472 = vunpack.c.l.b16 %v1464
  %v1473 = vunpack.c.l.b16 %v1465
  %v1474 = vunpack.c.l.b16 %v1466
  %v1475 = vunpack.c.l.b16 %v1467
  %v1476 = vpack.c.b16 %v1473, %v1472
  %v1477 = vpack.c.b16 %v1475, %v1474
  %v1479 = vsel %vm1197, %v1476, 0
  %v1482 = vsel %vm1197, %v1477, 0
  %1484 = vmatprep.subr.bf16.mxu0 0
  %1485 = vmatpush1.bf16.msra.mxu0 %v1462
  %1486 = vmatprep.subr.bf16.mxu0 0
  %1487 = vmatpush1.bf16.msra.mxu0 %v1463
  %1488 = vmatprep.subr.bf16.mxu0 0
  %1489 = vmatpush1.bf16.msra.mxu0 0
  %1490 = vmatprep.subr.bf16.mxu0 0
  %1491 = vmatpush1.bf16.msra.mxu0 0
  %1492 = vmatprep.subr.bf16.mxu0 0
  %1493 = vmatpush1.bf16.msra.mxu0 0
  %1494 = vmatprep.subr.bf16.mxu0 0
  %1495 = vmatpush1.bf16.msra.mxu0 0
  %1496 = vmatprep.subr.bf16.mxu0 0
  %1497 = vmatpush1.bf16.msra.mxu0 0
  %1498 = vmatprep.subr.bf16.mxu0 0
  %1499 = vmatpush1.bf16.msra.mxu0 0
  %1500 = vmatprep.subr.bf16.mxu0 0
  %1501 = vmatpush1.bf16.msra.mxu0 0
  %1502 = vmatprep.subr.bf16.mxu0 0
  %1503 = vmatpush1.bf16.msra.mxu0 0
  %1504 = vmatprep.subr.bf16.mxu0 0
  %1505 = vmatpush1.bf16.msra.mxu0 0
  %1506 = vmatprep.subr.bf16.mxu0 0
  %1507 = vmatpush1.bf16.msra.mxu0 0
  %1508 = vmatprep.subr.bf16.mxu0 0
  %1509 = vmatpush1.bf16.msra.mxu0 0
  %1510 = vmatprep.subr.bf16.mxu0 0
  %1511 = vmatpush1.bf16.msra.mxu0 0
  %1512 = vmatprep.subr.bf16.mxu0 0
  %1513 = vmatpush1.bf16.msra.mxu0 0
  %1514 = vmatprep.subr.bf16.mxu0 0
  %1515 = vmatpush1.bf16.msra.mxu0 0
  %1516 = vmatprep.mubr.bf16.mxu0 0
  %1517 = vmatmul.mubr.bf16.gmra.mrb[0].mxu0 %v1479
  %v1518 = vpop.f32.mrb[0].mxu0
  %v1519 = vadd.f32 0.0, %v1518
  %v1520 = vpop.f32.mrb[0].mxu0
  %v1521 = vpop.f32.mrb[0].mxu0
  %v1522 = vadd.f32 0.0, %v1521
  %v1523 = vpop.f32.mrb[0].mxu0
  %1524 = vmatprep.mubr.bf16.mxu0 0
  %1525 = vmatmul.mubr.bf16.gmra.mrb[0].mxu0 %v1482
  %v1526 = vpop.f32.mrb[0].mxu0
  %v1527 = vadd.f32 0.0, %v1526
  %v1528 = vpop.f32.mrb[0].mxu0
  %v1529 = vpop.f32.mrb[0].mxu0
  %v1530 = vadd.f32 0.0, %v1529
  %v1531 = vpop.f32.mrb[0].mxu0
  %1532 = vdwg.mxu0
  %v1533 = vadd.f32 %v1458, %v1519
  %v1534 = vadd.f32 %v1459, %v1522
  %v1535 = vadd.f32 %v1460, %v1527
  %v1536 = vadd.f32 %v1461, %v1530
  %v1537 = vmul.bf16 %v1165, %v710
  %v1538 = vmul.bf16 %v1166, %v710
  %1539 = vrot.lane.b32.xlu0 %v1476, 96
  %v1540 = vpop.permute.xlu0 %1539
  %1541 = vrot.lane.b32.xlu0 %v1477, 96
  %v1542 = vpop.permute.xlu0 %1541
  %1545 = vrot.lane.b32.xlu0 %v1537, 127
  %v1546 = vpop.permute.xlu0 %1545
  %1547 = vrot.lane.b32.xlu0 %v1538, 127
  %v1548 = vpop.permute.xlu0 %1547
  %v1552 = vsel %vm1197, %v1540, 0
  %v1555 = vsel %vm1197, %v1542, 0
  %1557 = vmatprep.subr.bf16.mxu0 0
  %1558 = vmatpush1.bf16.msra.mxu0 %v1546
  %1559 = vmatprep.subr.bf16.mxu0 0
  %1560 = vmatpush1.bf16.msra.mxu0 %v1548
  %1561 = vmatprep.subr.bf16.mxu0 0
  %1562 = vmatpush1.bf16.msra.mxu0 0
  %1563 = vmatprep.subr.bf16.mxu0 0
  %1564 = vmatpush1.bf16.msra.mxu0 0
  %1565 = vmatprep.subr.bf16.mxu0 0
  %1566 = vmatpush1.bf16.msra.mxu0 0
  %1567 = vmatprep.subr.bf16.mxu0 0
  %1568 = vmatpush1.bf16.msra.mxu0 0
  %1569 = vmatprep.subr.bf16.mxu0 0
  %1570 = vmatpush1.bf16.msra.mxu0 0
  %1571 = vmatprep.subr.bf16.mxu0 0
  %1572 = vmatpush1.bf16.msra.mxu0 0
  %1573 = vmatprep.subr.bf16.mxu0 0
  %1574 = vmatpush1.bf16.msra.mxu0 0
  %1575 = vmatprep.subr.bf16.mxu0 0
  %1576 = vmatpush1.bf16.msra.mxu0 0
  %1577 = vmatprep.subr.bf16.mxu0 0
  %1578 = vmatpush1.bf16.msra.mxu0 0
  %1579 = vmatprep.subr.bf16.mxu0 0
  %1580 = vmatpush1.bf16.msra.mxu0 0
  %1581 = vmatprep.subr.bf16.mxu0 0
  %1582 = vmatpush1.bf16.msra.mxu0 0
  %1583 = vmatprep.subr.bf16.mxu0 0
  %1584 = vmatpush1.bf16.msra.mxu0 0
  %1585 = vmatprep.subr.bf16.mxu0 0
  %1586 = vmatpush1.bf16.msra.mxu0 0
  %1587 = vmatprep.subr.bf16.mxu0 0
  %1588 = vmatpush1.bf16.msra.mxu0 0
  %1589 = vmatprep.mubr.bf16.mxu0 0
  %1590 = vmatmul.mubr.bf16.gmra.mrb[0].mxu0 %v1552
  %v1591 = vpop.f32.mrb[0].mxu0
  %v1592 = vadd.f32 0.0, %v1591
  %v1593 = vpop.f32.mrb[0].mxu0
  %v1594 = vpop.f32.mrb[0].mxu0
  %v1595 = vadd.f32 0.0, %v1594
  %v1596 = vpop.f32.mrb[0].mxu0
  %1597 = vmatprep.mubr.bf16.mxu0 0
  %1598 = vmatmul.mubr.bf16.gmra.mrb[0].mxu0 %v1555
  %v1599 = vpop.f32.mrb[0].mxu0
  %v1600 = vadd.f32 0.0, %v1599
  %v1601 = vpop.f32.mrb[0].mxu0
  %v1602 = vpop.f32.mrb[0].mxu0
  %v1603 = vadd.f32 0.0, %v1602
  %v1604 = vpop.f32.mrb[0].mxu0
  %1605 = vdwg.mxu0
  %v1606 = vadd.f32 %v1533, %v1592
  %v1607 = vadd.f32 %v1534, %v1595
  %v1608 = vadd.f32 %v1535, %v1600
  %v1609 = vadd.f32 %v1536, %v1603
  %v1610 = vmul.bf16 %v1165, %v804
  %v1611 = vmul.bf16 %v1166, %v804
  %1612 = vrot.lane.b32.xlu0 %v1476, 64
  %v1613 = vpop.permute.xlu0 %1612
  %1614 = vrot.lane.b32.xlu0 %v1477, 64
  %v1615 = vpop.permute.xlu0 %1614
  %1618 = vrot.lane.b32.xlu0 %v1610, 121
  %v1619 = vpop.permute.xlu0 %1618
  %1620 = vrot.lane.b32.xlu0 %v1611, 121
  %v1621 = vpop.permute.xlu0 %1620
  %v1625 = vsel %vm1197, %v1613, 0
  %v1628 = vsel %vm1197, %v1615, 0
  %1630 = vmatprep.subr.bf16.mxu0 0
  %1631 = vmatpush1.bf16.msra.mxu0 %v1619
  %1632 = vmatprep.subr.bf16.mxu0 0
  %1633 = vmatpush1.bf16.msra.mxu0 %v1621
  %1634 = vmatprep.subr.bf16.mxu0 0
  %1635 = vmatpush1.bf16.msra.mxu0 0
  %1636 = vmatprep.subr.bf16.mxu0 0
  %1637 = vmatpush1.bf16.msra.mxu0 0
  %1638 = vmatprep.subr.bf16.mxu0 0
  %1639 = vmatpush1.bf16.msra.mxu0 0
  %1640 = vmatprep.subr.bf16.mxu0 0
  %1641 = vmatpush1.bf16.msra.mxu0 0
  %1642 = vmatprep.subr.bf16.mxu0 0
  %1643 = vmatpush1.bf16.msra.mxu0 0
  %1644 = vmatprep.subr.bf16.mxu0 0
  %1645 = vmatpush1.bf16.msra.mxu0 0
  %1646 = vmatprep.subr.bf16.mxu0 0
  %1647 = vmatpush1.bf16.msra.mxu0 0
  %1648 = vmatprep.subr.bf16.mxu0 0
  %1649 = vmatpush1.bf16.msra.mxu0 0
  %1650 = vmatprep.subr.bf16.mxu0 0
  %1651 = vmatpush1.bf16.msra.mxu0 0
  %1652 = vmatprep.subr.bf16.mxu0 0
  %1653 = vmatpush1.bf16.msra.mxu0 0
  %1654 = vmatprep.subr.bf16.mxu0 0
  %1655 = vmatpush1.bf16.msra.mxu0 0
  %1656 = vmatprep.subr.bf16.mxu0 0
  %1657 = vmatpush1.bf16.msra.mxu0 0
  %1658 = vmatprep.subr.bf16.mxu0 0
  %1659 = vmatpush1.bf16.msra.mxu0 0
  %1660 = vmatprep.subr.bf16.mxu0 0
  %1661 = vmatpush1.bf16.msra.mxu0 0
  %1662 = vmatprep.mubr.bf16.mxu0 0
  %1663 = vmatmul.mubr.bf16.gmra.mrb[0].mxu0 %v1625
  %v1664 = vpop.f32.mrb[0].mxu0
  %v1665 = vadd.f32 0.0, %v1664
  %v1666 = vpop.f32.mrb[0].mxu0
  %v1667 = vpop.f32.mrb[0].mxu0
  %v1668 = vadd.f32 0.0, %v1667
  %v1669 = vpop.f32.mrb[0].mxu0
  %1670 = vmatprep.mubr.bf16.mxu0 0
  %1671 = vmatmul.mubr.bf16.gmra.mrb[0].mxu0 %v1628
  %v1672 = vpop.f32.mrb[0].mxu0
  %v1673 = vadd.f32 0.0, %v1672
  %v1674 = vpop.f32.mrb[0].mxu0
  %v1675 = vpop.f32.mrb[0].mxu0
  %v1676 = vadd.f32 0.0, %v1675
  %v1677 = vpop.f32.mrb[0].mxu0
  %1678 = vdwg.mxu0
  %v1679 = vadd.f32 %v1606, %v1665
  %v1680 = vadd.f32 %v1607, %v1668
  %v1681 = vadd.f32 %v1608, %v1673
  %v1682 = vadd.f32 %v1609, %v1676
  %v1683 = vmul.bf16 %v1165, %v908
  %v1684 = vmul.bf16 %v1166, %v908
  %1685 = vrot.lane.b32.xlu0 %v1476, 32
  %v1686 = vpop.permute.xlu0 %1685
  %1687 = vrot.lane.b32.xlu0 %v1477, 32
  %v1688 = vpop.permute.xlu0 %1687
  %1691 = vrot.lane.b32.xlu0 %v1683, 120
  %v1692 = vpop.permute.xlu0 %1691
  %1693 = vrot.lane.b32.xlu0 %v1684, 120
  %v1694 = vpop.permute.xlu0 %1693
  %v1698 = vsel %vm1197, %v1686, 0
  %v1701 = vsel %vm1197, %v1688, 0
  %1703 = vmatprep.subr.bf16.mxu0 0
  %1704 = vmatpush1.bf16.msra.mxu0 %v1692
  %1705 = vmatprep.subr.bf16.mxu0 0
  %1706 = vmatpush1.bf16.msra.mxu0 %v1694
  %1707 = vmatprep.subr.bf16.mxu0 0
  %1708 = vmatpush1.bf16.msra.mxu0 0
  %1709 = vmatprep.subr.bf16.mxu0 0
  %1710 = vmatpush1.bf16.msra.mxu0 0
  %1711 = vmatprep.subr.bf16.mxu0 0
  %1712 = vmatpush1.bf16.msra.mxu0 0
  %1713 = vmatprep.subr.bf16.mxu0 0
  %1714 = vmatpush1.bf16.msra.mxu0 0
  %1715 = vmatprep.subr.bf16.mxu0 0
  %1716 = vmatpush1.bf16.msra.mxu0 0
  %1717 = vmatprep.subr.bf16.mxu0 0
  %1718 = vmatpush1.bf16.msra.mxu0 0
  %1719 = vmatprep.subr.bf16.mxu0 0
  %1720 = vmatpush1.bf16.msra.mxu0 0
  %1721 = vmatprep.subr.bf16.mxu0 0
  %1722 = vmatpush1.bf16.msra.mxu0 0
  %1723 = vmatprep.subr.bf16.mxu0 0
  %1724 = vmatpush1.bf16.msra.mxu0 0
  %1725 = vmatprep.subr.bf16.mxu0 0
  %1726 = vmatpush1.bf16.msra.mxu0 0
  %1727 = vmatprep.subr.bf16.mxu0 0
  %1728 = vmatpush1.bf16.msra.mxu0 0
  %1729 = vmatprep.subr.bf16.mxu0 0
  %1730 = vmatpush1.bf16.msra.mxu0 0
  %1731 = vmatprep.subr.bf16.mxu0 0
  %1732 = vmatpush1.bf16.msra.mxu0 0
  %1733 = vmatprep.subr.bf16.mxu0 0
  %1734 = vmatpush1.bf16.msra.mxu0 0
  %1735 = vmatprep.mubr.bf16.mxu0 0
  %1736 = vmatmul.mubr.bf16.gmra.mrb[0].mxu0 %v1698
  %v1737 = vpop.f32.mrb[0].mxu0
  %v1738 = vadd.f32 0.0, %v1737
  %v1739 = vpop.f32.mrb[0].mxu0
  %v1740 = vpop.f32.mrb[0].mxu0
  %v1741 = vadd.f32 0.0, %v1740
  %v1742 = vpop.f32.mrb[0].mxu0
  %1743 = vmatprep.mubr.bf16.mxu0 0
  %1744 = vmatmul.mubr.bf16.gmra.mrb[0].mxu0 %v1701
  %v1745 = vpop.f32.mrb[0].mxu0
  %v1746 = vadd.f32 0.0, %v1745
  %v1747 = vpop.f32.mrb[0].mxu0
  %v1748 = vpop.f32.mrb[0].mxu0
  %v1749 = vadd.f32 0.0, %v1748
  %v1750 = vpop.f32.mrb[0].mxu0
  %1751 = vdwg.mxu0
  %v1752 = vadd.f32 %v1679, %v1738
  %v1753 = vadd.f32 %v1680, %v1741
  %v1754 = vadd.f32 %v1681, %v1746
  %v1755 = vadd.f32 %v1682, %v1749
  %v1756 = vmul.bf16 %v1165, %v1002
  %v1757 = vmul.bf16 %v1166, %v1002
  %v1758 = vld [vmem:[%s10 + $0x8] sm:$0xf]
  %v1759 = vld [vmem:[%s10 + $0x14] sm:$0xf]
  %v1760 = vld [vmem:[%s10 + $0x20] sm:$0xf]
  %v1761 = vld [vmem:[%s10 + $0x2c] sm:$0xf]
  %v1766 = vunpack.c.l.b16 %v1758
  %v1767 = vunpack.c.l.b16 %v1759
  %v1768 = vunpack.c.l.b16 %v1760
  %v1769 = vunpack.c.l.b16 %v1761
  %v1770 = vpack.c.b16 %v1767, %v1766
  %v1771 = vpack.c.b16 %v1769, %v1768
  %1774 = vrot.lane.b32.xlu0 %v1756, 119
  %v1775 = vpop.permute.xlu0 %1774
  %1776 = vrot.lane.b32.xlu0 %v1757, 119
  %v1777 = vpop.permute.xlu0 %1776
  %v1781 = vsel %vm1197, %v1770, 0
  %v1784 = vsel %vm1197, %v1771, 0
  %1786 = vmatprep.subr.bf16.mxu0 0
  %1787 = vmatpush1.bf16.msra.mxu0 %v1775
  %1788 = vmatprep.subr.bf16.mxu0 0
  %1789 = vmatpush1.bf16.msra.mxu0 %v1777
  %1790 = vmatprep.subr.bf16.mxu0 0
  %1791 = vmatpush1.bf16.msra.mxu0 0
  %1792 = vmatprep.subr.bf16.mxu0 0
  %1793 = vmatpush1.bf16.msra.mxu0 0
  %1794 = vmatprep.subr.bf16.mxu0 0
  %1795 = vmatpush1.bf16.msra.mxu0 0
  %1796 = vmatprep.subr.bf16.mxu0 0
  %1797 = vmatpush1.bf16.msra.mxu0 0
  %1798 = vmatprep.subr.bf16.mxu0 0
  %1799 = vmatpush1.bf16.msra.mxu0 0
  %1800 = vmatprep.subr.bf16.mxu0 0
  %1801 = vmatpush1.bf16.msra.mxu0 0
  %1802 = vmatprep.subr.bf16.mxu0 0
  %1803 = vmatpush1.bf16.msra.mxu0 0
  %1804 = vmatprep.subr.bf16.mxu0 0
  %1805 = vmatpush1.bf16.msra.mxu0 0
  %1806 = vmatprep.subr.bf16.mxu0 0
  %1807 = vmatpush1.bf16.msra.mxu0 0
  %1808 = vmatprep.subr.bf16.mxu0 0
  %1809 = vmatpush1.bf16.msra.mxu0 0
  %1810 = vmatprep.subr.bf16.mxu0 0
  %1811 = vmatpush1.bf16.msra.mxu0 0
  %1812 = vmatprep.subr.bf16.mxu0 0
  %1813 = vmatpush1.bf16.msra.mxu0 0
  %1814 = vmatprep.subr.bf16.mxu0 0
  %1815 = vmatpush1.bf16.msra.mxu0 0
  %1816 = vmatprep.subr.bf16.mxu0 0
  %1817 = vmatpush1.bf16.msra.mxu0 0
  %1818 = vmatprep.mubr.bf16.mxu0 0
  %1819 = vmatmul.mubr.bf16.gmra.mrb[0].mxu0 %v1781
  %v1820 = vpop.f32.mrb[0].mxu0
  %v1821 = vadd.f32 0.0, %v1820
  %v1822 = vpop.f32.mrb[0].mxu0
  %v1823 = vpop.f32.mrb[0].mxu0
  %v1824 = vadd.f32 0.0, %v1823
  %v1825 = vpop.f32.mrb[0].mxu0
  %1826 = vmatprep.mubr.bf16.mxu0 0
  %1827 = vmatmul.mubr.bf16.gmra.mrb[0].mxu0 %v1784
  %v1828 = vpop.f32.mrb[0].mxu0
  %v1829 = vadd.f32 0.0, %v1828
  %v1830 = vpop.f32.mrb[0].mxu0
  %v1831 = vpop.f32.mrb[0].mxu0
  %v1832 = vadd.f32 0.0, %v1831
  %v1833 = vpop.f32.mrb[0].mxu0
  %1834 = vdwg.mxu0
  %v1835 = vadd.f32 %v1752, %v1821
  %v1836 = vadd.f32 %v1753, %v1824
  %v1837 = vadd.f32 %v1754, %v1829
  %v1838 = vadd.f32 %v1755, %v1832
  %v1839 = vld [vmem:[%s11] sm:$0xff]
  %v1840 = vld [vmem:[%s11 + $0x8] sm:$0xff]
  %v1841 = vld [vmem:[%s11 + $0x10] sm:$0xff]
  %v1842 = vld [vmem:[%s11 + $0x18] sm:$0xff]
  %1844 = vset.pattern.permute.xlu0 0
  %1845 = vperm.xlu0 %1844, %v1839
  %v1846 = vpop.permute.xlu0 %1845
  %1849 = vset.pattern.permute.xlu0 0
  %1850 = vperm.xlu0 %1849, %v1840
  %v1851 = vpop.permute.xlu0 %1850
  %1854 = vset.pattern.permute.xlu0 0
  %1855 = vperm.xlu0 %1854, %v1841
  %v1856 = vpop.permute.xlu0 %1855
  %1859 = vset.pattern.permute.xlu0 0
  %1860 = vperm.xlu0 %1859, %v1842
  %v1861 = vpop.permute.xlu0 %1860
  %v1863 = vadd.f32 %v1835, %v1846
  %v1864 = vadd.f32 %v1836, %v1851
  %v1865 = vadd.f32 %v1837, %v1856
  %v1866 = vadd.f32 %v1838, %v1861
  %v1867 = vmax.f32 %v1863, 0.0
  %v1868 = vmax.f32 %v1864, 0.0
  %v1869 = vmax.f32 %v1865, 0.0
  %v1870 = vmax.f32 %v1866, 0.0
  %v1871 = vpack.c.bf16 %v1868, %v1867
  %v1872 = vpack.c.bf16 %v1870, %v1869
  %v1875 = vunpack.c.l.b16 %v1871
  %v1876 = vunpack.c.h.b16 %v1871
  %v1877 = vunpack.c.l.b16 %v1872
  %v1878 = vunpack.c.h.b16 %v1872
  %v1879 = vpack.c.b16 %v1875, %v1875
  %v1880 = vpack.c.b16 %v1876, %v1876
  %v1881 = vpack.c.b16 %v1877, %v1877
  %v1882 = vpack.c.b16 %v1878, %v1878
  %1887 = vst [vmem:[%s12] sm:$0xf] %v1879
  %1888 = vst [vmem:[%s12 + $0x4] sm:$0xf] %v1880
  %1889 = vst [vmem:[%s12 + $0x8] sm:$0xf] %v1881
  %1890 = vst [vmem:[%s12 + $0xc] sm:$0xf] %v1882
  // Predicated region
  $region50: #{leaky_recurrent_conv_layer_forward.1} parent=0 // pred_check
    _
  $region51: #{leaky_recurrent_conv_layer_forward.1} parent=0 // pred_check_branch
    %1892 = sbr.rel (0) target = $region53
  $region52: #{leaky_recurrent_conv_layer_forward.1} parent=0 // pred_region
    _
  $region53: #{leaky_recurrent_conv_layer_forward.1} parent=0 // pred_fallthru
    _
  // Predicated region
  $region54: #{leaky_recurrent_conv_layer_forward.1} parent=0 // pred_check
    _
  $region55: #{leaky_recurrent_conv_layer_forward.1} parent=0 // pred_check_branch
    %1894 = sbr.rel (0) target = $region57
  $region56: #{leaky_recurrent_conv_layer_forward.1} parent=0 // pred_region
    _
  $region57: #{leaky_recurrent_conv_layer_forward.1} parent=0 // pred_fallthru
    _
  // Predicated region
  $region58: #{leaky_recurrent_conv_layer_forward.1} parent=0 // pred_check
    _
  $region59: #{leaky_recurrent_conv_layer_forward.1} parent=0 // pred_check_branch
    %1896 = sbr.rel (0) target = $region61
  $region60: #{leaky_recurrent_conv_layer_forward.1} parent=0 // pred_region
    _
  $region61: #{leaky_recurrent_conv_layer_forward.1} parent=0 // pred_fallthru
    _
  // Predicated region
  $region62: #{leaky_recurrent_conv_layer_forward.1} parent=0 // pred_check
    _
  $region63: #{leaky_recurrent_conv_layer_forward.1} parent=0 // pred_check_branch
    %1898 = sbr.rel (0) target = $region65
  $region64: #{leaky_recurrent_conv_layer_forward.1} parent=0 // pred_region
    _
  $region65: #{leaky_recurrent_conv_layer_forward.1} parent=0 // pred_fallthru
    _
  // Predicated region
  $region66: #{leaky_recurrent_conv_layer_forward.1} parent=0 // pred_check
    _
  $region67: #{leaky_recurrent_conv_layer_forward.1} parent=0 // pred_check_branch
    %1900 = sbr.rel (0) target = $region69
  $region68: #{leaky_recurrent_conv_layer_forward.1} parent=0 // pred_region
    _
  $region69: #{leaky_recurrent_conv_layer_forward.1} parent=0 // pred_fallthru
    _
  // Predicated region
  $region70: #{leaky_recurrent_conv_layer_forward.1} parent=0 // pred_check
    _
  $region71: #{leaky_recurrent_conv_layer_forward.1} parent=0 // pred_check_branch
    %1902 = sbr.rel (0) target = $region73
  $region72: #{leaky_recurrent_conv_layer_forward.1} parent=0 // pred_region
    _
  $region73: #{leaky_recurrent_conv_layer_forward.1} parent=0 // pred_fallthru
    _

</llo_original>
